<compile_context>
chip_gen: v5e
topology: v5e:2x2
jax: 0.10.0
libtpu: 0.0.40
codegen_flags: <defaults>
</compile_context>

<pallas_src>
import jax
import jax.numpy as jnp
from jax import lax
from jax.experimental import pallas as pl
from jax.experimental.pallas import tpu as pltpu

_CONTRACT_0_0 = (((0,), (0,)), ((), ()))   # x^T @ y without materializing x.T


def _rec_loss_kernel(alpha_ref, beta_ref, user_ref, ia_ref, crit_ref,
                     crit_sum_ref, sel_ref, mask_ref, out_ref):
    B, CE = user_ref.shape
    C, _, J, E = sel_ref.shape

    # ---- packed gram similarity term: ONE MXU gram per operand -------------
    item_gram = lax.dot_general(ia_ref[...], ia_ref[...], _CONTRACT_0_0,
                                preferred_element_type=jnp.float32)   # (CE,CE)
    user_gram = lax.dot_general(user_ref[...], user_ref[...], _CONTRACT_0_0,
                                preferred_element_type=jnp.float32)   # (CE,CE)
    crit_gram = lax.dot_general(crit_ref[...], crit_ref[...], _CONTRACT_0_0,
                                preferred_element_type=jnp.float32)   # (CE,CE)

    # Block-diagonal alpha*beta weight: only the per-criterion E x E diagonal
    # blocks of the packed grams contribute to the reference loss.  Built with
    # range compares (no integer division) on a 2-D iota.
    row_id = lax.broadcasted_iota(jnp.int32, (CE, CE), 0)
    col_id = lax.broadcasted_iota(jnp.int32, (CE, CE), 1)
    wblk = jnp.zeros((CE, CE), jnp.float32)
    for c in range(C):                                    # static, C is tiny
        lo, hi = c * E, (c + 1) * E
        in_blk = ((row_id >= lo) & (row_id < hi)
                  & (col_id >= lo) & (col_id < hi))
        wblk = jnp.where(in_blk, alpha_ref[c] * beta_ref[c], wblk)
    total = jnp.sum(wblk * item_gram * user_gram * crit_gram)

    # ---- fused score path ---------------------------------------------------
    # w[b, c*E + k] = u[b, c*E + k] * crit_sum[c, k]   (one VPU pass on (B,CE))
    w = user_ref[...] * crit_sum_ref[...]
    sel = sel_ref[...]                                    # (C,B,J,E)
    mask = mask_ref[...]                                  # (C,B,J)
    for c in range(C):                                    # static, unrolled
        w_c = w[:, c * E:(c + 1) * E]                     # (B,E) static slice
        s = jnp.sum(sel[c] * w_c[:, None, :], axis=-1) * mask[c]      # (B,J)
        total = total + alpha_ref[c] * jnp.sum(
            (1.0 - beta_ref[c]) * s * s - 2.0 * s)

    # ---- reg term: exact VPU square-sums (operands already in VMEM) --------
    regsum = (jnp.sum(user_ref[...] * user_ref[...])
              + jnp.sum(ia_ref[...] * ia_ref[...]))

    # single lane-dense output: lane 0 = total_loss, lane 1 = reg sum-of-squares
    lane = lax.broadcasted_iota(jnp.int32, (1, 128), 1)
    out_ref[...] = (jnp.where(lane == 0, total, 0.0)
                    + jnp.where(lane == 1, regsum, 0.0))


def rec_loss_pallas(input_u, labels, ua_embeddings, ia_embeddings,
                    crit_embeddings, alpha, beta, decay, item_total,
                    num_criteria, embed_size):
    C, E = num_criteria, embed_size
    CE = C * E
    B = input_u.shape[0]
    N1 = ia_embeddings.shape[0]
    L = crit_embeddings.shape[1]

    # ---- glue (all cheap; NO full item-table relayout) ----------------------
    user_packed = ua_embeddings[input_u]                        # (B, C*E) native
    ia_packed = ia_embeddings.reshape(N1, CE)                   # pure reshape
    crit_packed = jnp.transpose(crit_embeddings, (1, 0, 2)).reshape(L, CE)  # tiny
    crit_sum = jnp.sum(crit_embeddings, axis=1).reshape(1, CE)  # (1, C*E)

    # per-criterion label gather straight from the NATIVE (N1, C, E) layout
    # TODO(synk): data-dependent item gather stays an XLA gather in the wrapper;
    # at production N1/B/J move it in-kernel (scalar-prefetched labels + DMA).
    cidx = jnp.arange(C)[:, None, None]
    sel = ia_embeddings[labels, cidx, :]                        # (C,B,J,E)
    mask = (labels != item_total).astype(jnp.float32)           # (C,B,J)

    out = pl.pallas_call(
        _rec_loss_kernel,
        out_shape=jax.ShapeDtypeStruct((1, 128), jnp.float32),
        in_specs=[
            pl.BlockSpec(memory_space=pltpu.MemorySpace.SMEM),   # alpha (C,)
            pl.BlockSpec(memory_space=pltpu.MemorySpace.SMEM),   # beta  (C,)
            pl.BlockSpec(memory_space=pltpu.MemorySpace.VMEM),   # user  (B,CE)
            pl.BlockSpec(memory_space=pltpu.MemorySpace.VMEM),   # items (N1,CE)
            pl.BlockSpec(memory_space=pltpu.MemorySpace.VMEM),   # crit  (L,CE)
            pl.BlockSpec(memory_space=pltpu.MemorySpace.VMEM),   # crit_sum (1,CE)
            pl.BlockSpec(memory_space=pltpu.MemorySpace.VMEM),   # sel   (C,B,J,E)
            pl.BlockSpec(memory_space=pltpu.MemorySpace.VMEM),   # mask  (C,B,J)
        ],
        out_specs=pl.BlockSpec(memory_space=pltpu.MemorySpace.VMEM),
    )(alpha, beta, user_packed, ia_packed, crit_packed, crit_sum, sel, mask)

    total_loss = out[0, 0]
    reg_loss = decay * 0.5 * out[0, 1]
    return total_loss, reg_loss


# ---------------- pure-JAX reference (mirrors the PyTorch forward) ----------
def rec_loss_ref(input_u, labels, ua, ia, crit, alpha, beta, decay,
                 item_total, C, E):
    B = input_u.shape[0]
    u = ua[input_u].reshape(B, C, E)
    scores_list = []
    for idx in range(C):
        sel = ia[:, idx, :][labels[idx]]
        m = (labels[idx] != item_total).astype(jnp.float32)
        masked = jnp.einsum('ab,abc->abc', m, sel)
        inter = jnp.einsum('ac,abc->abc', u[:, idx, :], masked)
        score = jnp.einsum('ajk,lk->aj', inter, crit[idx])
        scores_list.append(score)
    total = 0.0
    for idx in range(C):
        item_sim = jnp.einsum('ab,ac->bc', ia[:, idx, :], ia[:, idx, :],
                              precision=jax.lax.Precision.HIGHEST)
        user_sim = jnp.einsum('ab,ac->bc', u[:, idx, :], u[:, idx, :],
                              precision=jax.lax.Precision.HIGHEST)
        crit_gram = jnp.matmul(crit[idx].T, crit[idx],
                               precision=jax.lax.Precision.HIGHEST)
        cl = beta[idx] * jnp.sum(item_sim * user_sim * crit_gram)
        cl += jnp.sum((1.0 - beta[idx]) * jnp.square(scores_list[idx])
                      - 2.0 * scores_list[idx])
        total = total + alpha[idx] * cl
    reg = decay * 0.5 * (jnp.sum(jnp.square(u)) + jnp.sum(jnp.square(ia)))
    return total, reg


if __name__ == "__main__":
    # ---- synthetic config (deterministic) ----
    n_users, n_items = 10, 16
    C = 3            # num criteria
    E = 32           # embed_size  (C*E = 96 <= 128 lanes -> packed gram valid)
    B = 8            # batch of users
    J = 8            # labels per user per criterion
    L = 2            # rows of each criterion embedding
    item_total = n_items          # padding index
    N1 = n_items + 1
    decay = 1e-3
    alpha = jnp.array([0.5, 0.3, 0.2], dtype=jnp.float32)
    beta = jnp.array([0.1, 0.2, 0.3], dtype=jnp.float32)

    key = jax.random.PRNGKey(0)
    k1, k2, k3, k4, k5 = jax.random.split(key, 5)
    ua_embeddings = 0.1 * jax.random.normal(k1, (n_users, C * E), jnp.float32)
    ia_embeddings = 0.1 * jax.random.normal(k2, (N1, C, E), jnp.float32)
    crit_embeddings = 0.1 * jax.random.normal(k3, (C, L, E), jnp.float32)
    input_u = jax.random.randint(k4, (B,), 0, n_users)
    labels = jax.random.randint(k5, (C, B, J), 0, item_total + 1)  # may hit pad idx

    total_loss, reg_loss = rec_loss_pallas(
        input_u, labels, ua_embeddings, ia_embeddings, crit_embeddings,
        alpha, beta, decay, item_total, C, E)
    jax.block_until_ready((total_loss, reg_loss))

    ref_total, ref_reg = rec_loss_ref(
        input_u, labels, ua_embeddings, ia_embeddings, crit_embeddings,
        alpha, beta, decay, item_total, C, E)

    assert jnp.allclose(total_loss, ref_total, rtol=1e-3, atol=1e-3), \
        (total_loss, ref_total)
    assert jnp.allclose(reg_loss, ref_reg, rtol=1e-4, atol=1e-6), \
        (reg_loss, ref_reg)

    print("KERNEL_OK")
</pallas_src>

<mosaic_0001>
module attributes {stable_mosaic.version = 11 : i64} {
  func.func @_rec_loss_kernel(%arg0: memref<3xf32, #tpu.memory_space<smem>>, %arg1: memref<3xf32, #tpu.memory_space<smem>>, %arg2: memref<8x96xf32, #tpu.memory_space<vmem>>, %arg3: memref<17x96xf32, #tpu.memory_space<vmem>>, %arg4: memref<2x96xf32, #tpu.memory_space<vmem>>, %arg5: memref<1x96xf32, #tpu.memory_space<vmem>>, %arg6: memref<3x8x8x32xf32, #tpu.memory_space<vmem>>, %arg7: memref<3x8x8xf32, #tpu.memory_space<vmem>>, %arg8: memref<1x128xf32, #tpu.memory_space<vmem>>) attributes {dimension_semantics = [], scalar_prefetch = 0 : i64, scratch_operands = 0 : i64, tpu.core_type = #tpu.core_type<tc>} {
    %c0 = arith.constant 0 : index
    %c0_0 = arith.constant 0 : index
    %0 = vector.load %arg3[%c0, %c0_0] : memref<17x96xf32, #tpu.memory_space<vmem>>, vector<17x96xf32>
    %c0_1 = arith.constant 0 : index
    %c0_2 = arith.constant 0 : index
    %1 = vector.load %arg3[%c0_1, %c0_2] : memref<17x96xf32, #tpu.memory_space<vmem>>, vector<17x96xf32>
    %cst = arith.constant dense<0.000000e+00> : vector<96x96xf32>
    %2 = tpu.matmul %0, %1, %cst {dimension_numbers = #tpu.dot_dimension_numbers<[0], [0], [1], [1], [0, 1, 1, 1], [], []>} : vector<17x96xf32>, vector<17x96xf32>, vector<96x96xf32> -> vector<96x96xf32>
    %c0_3 = arith.constant 0 : index
    %c0_4 = arith.constant 0 : index
    %3 = vector.load %arg2[%c0_3, %c0_4] : memref<8x96xf32, #tpu.memory_space<vmem>>, vector<8x96xf32>
    %c0_5 = arith.constant 0 : index
    %c0_6 = arith.constant 0 : index
    %4 = vector.load %arg2[%c0_5, %c0_6] : memref<8x96xf32, #tpu.memory_space<vmem>>, vector<8x96xf32>
    %cst_7 = arith.constant dense<0.000000e+00> : vector<96x96xf32>
    %5 = tpu.matmul %3, %4, %cst_7 {dimension_numbers = #tpu.dot_dimension_numbers<[0], [0], [1], [1], [0, 1, 1, 1], [], []>} : vector<8x96xf32>, vector<8x96xf32>, vector<96x96xf32> -> vector<96x96xf32>
    %c0_8 = arith.constant 0 : index
    %c0_9 = arith.constant 0 : index
    %6 = vector.load %arg4[%c0_8, %c0_9] : memref<2x96xf32, #tpu.memory_space<vmem>>, vector<2x96xf32>
    %c0_10 = arith.constant 0 : index
    %c0_11 = arith.constant 0 : index
    %7 = vector.load %arg4[%c0_10, %c0_11] : memref<2x96xf32, #tpu.memory_space<vmem>>, vector<2x96xf32>
    %cst_12 = arith.constant dense<0.000000e+00> : vector<96x96xf32>
    %8 = tpu.matmul %6, %7, %cst_12 {dimension_numbers = #tpu.dot_dimension_numbers<[0], [0], [1], [1], [0, 1, 1, 1], [], []>} : vector<2x96xf32>, vector<2x96xf32>, vector<96x96xf32> -> vector<96x96xf32>
    %9 = tpu.iota {dimensions = array<i32: 0>} : vector<96x96xi32>
    %10 = tpu.iota {dimensions = array<i32: 1>} : vector<96x96xi32>
    %cst_13 = arith.constant 0.000000e+00 : f32
    %11 = vector.broadcast %cst_13 : f32 to vector<96x96xf32>
    %c0_i32 = arith.constant 0 : i32
    %12 = vector.broadcast %c0_i32 : i32 to vector<96x96xi32>
    %13 = arith.cmpi sge, %9, %12 : vector<96x96xi32>
    %c32_i32 = arith.constant 32 : i32
    %14 = vector.broadcast %c32_i32 : i32 to vector<96x96xi32>
    %15 = arith.cmpi slt, %9, %14 : vector<96x96xi32>
    %16 = arith.andi %13, %15 : vector<96x96xi1>
    %c0_i32_14 = arith.constant 0 : i32
    %17 = vector.broadcast %c0_i32_14 : i32 to vector<96x96xi32>
    %18 = arith.cmpi sge, %10, %17 : vector<96x96xi32>
    %19 = arith.andi %16, %18 : vector<96x96xi1>
    %c32_i32_15 = arith.constant 32 : i32
    %20 = vector.broadcast %c32_i32_15 : i32 to vector<96x96xi32>
    %21 = arith.cmpi slt, %10, %20 : vector<96x96xi32>
    %22 = arith.andi %19, %21 : vector<96x96xi1>
    %c0_16 = arith.constant 0 : index
    %23 = memref.load %arg0[%c0_16] : memref<3xf32, #tpu.memory_space<smem>>
    %c0_17 = arith.constant 0 : index
    %24 = memref.load %arg1[%c0_17] : memref<3xf32, #tpu.memory_space<smem>>
    %25 = arith.mulf %23, %24 : f32
    %26 = vector.broadcast %25 : f32 to vector<96x96xf32>
    %27 = arith.select %22, %26, %11 : vector<96x96xi1>, vector<96x96xf32>
    %c32_i32_18 = arith.constant 32 : i32
    %28 = vector.broadcast %c32_i32_18 : i32 to vector<96x96xi32>
    %29 = arith.cmpi sge, %9, %28 : vector<96x96xi32>
    %c64_i32 = arith.constant 64 : i32
    %30 = vector.broadcast %c64_i32 : i32 to vector<96x96xi32>
    %31 = arith.cmpi slt, %9, %30 : vector<96x96xi32>
    %32 = arith.andi %29, %31 : vector<96x96xi1>
    %c32_i32_19 = arith.constant 32 : i32
    %33 = vector.broadcast %c32_i32_19 : i32 to vector<96x96xi32>
    %34 = arith.cmpi sge, %10, %33 : vector<96x96xi32>
    %35 = arith.andi %32, %34 : vector<96x96xi1>
    %c64_i32_20 = arith.constant 64 : i32
    %36 = vector.broadcast %c64_i32_20 : i32 to vector<96x96xi32>
    %37 = arith.cmpi slt, %10, %36 : vector<96x96xi32>
    %38 = arith.andi %35, %37 : vector<96x96xi1>
    %c1 = arith.constant 1 : index
    %39 = memref.load %arg0[%c1] : memref<3xf32, #tpu.memory_space<smem>>
    %c1_21 = arith.constant 1 : index
    %40 = memref.load %arg1[%c1_21] : memref<3xf32, #tpu.memory_space<smem>>
    %41 = arith.mulf %39, %40 : f32
    %42 = vector.broadcast %41 : f32 to vector<96x96xf32>
    %43 = arith.select %38, %42, %27 : vector<96x96xi1>, vector<96x96xf32>
    %c64_i32_22 = arith.constant 64 : i32
    %44 = vector.broadcast %c64_i32_22 : i32 to vector<96x96xi32>
    %45 = arith.cmpi sge, %9, %44 : vector<96x96xi32>
    %c96_i32 = arith.constant 96 : i32
    %46 = vector.broadcast %c96_i32 : i32 to vector<96x96xi32>
    %47 = arith.cmpi slt, %9, %46 : vector<96x96xi32>
    %48 = arith.andi %45, %47 : vector<96x96xi1>
    %c64_i32_23 = arith.constant 64 : i32
    %49 = vector.broadcast %c64_i32_23 : i32 to vector<96x96xi32>
    %50 = arith.cmpi sge, %10, %49 : vector<96x96xi32>
    %51 = arith.andi %48, %50 : vector<96x96xi1>
    %c96_i32_24 = arith.constant 96 : i32
    %52 = vector.broadcast %c96_i32_24 : i32 to vector<96x96xi32>
    %53 = arith.cmpi slt, %10, %52 : vector<96x96xi32>
    %54 = arith.andi %51, %53 : vector<96x96xi1>
    %c2 = arith.constant 2 : index
    %55 = memref.load %arg0[%c2] : memref<3xf32, #tpu.memory_space<smem>>
    %c2_25 = arith.constant 2 : index
    %56 = memref.load %arg1[%c2_25] : memref<3xf32, #tpu.memory_space<smem>>
    %57 = arith.mulf %55, %56 : f32
    %58 = vector.broadcast %57 : f32 to vector<96x96xf32>
    %59 = arith.select %54, %58, %43 : vector<96x96xi1>, vector<96x96xf32>
    %60 = arith.mulf %59, %2 : vector<96x96xf32>
    %61 = arith.mulf %60, %5 : vector<96x96xf32>
    %62 = arith.mulf %61, %8 : vector<96x96xf32>
    %63 = vector.shape_cast %62 : vector<96x96xf32> to vector<1x96x96xf32>
    %cst_26 = arith.constant dense<0.000000e+00> : vector<1xf32>
    %64 = vector.multi_reduction <add>, %63, %cst_26 [1, 2] : vector<1x96x96xf32> to vector<1xf32>
    %65 = vector.shape_cast %64 : vector<1xf32> to vector<1x1x1xf32>
    %66 = vector.extract %65[0, 0, 0] : f32 from vector<1x1x1xf32>
    %c0_27 = arith.constant 0 : index
    %c0_28 = arith.constant 0 : index
    %67 = vector.load %arg2[%c0_27, %c0_28] : memref<8x96xf32, #tpu.memory_space<vmem>>, vector<8x96xf32>
    %c0_29 = arith.constant 0 : index
    %c0_30 = arith.constant 0 : index
    %68 = vector.load %arg5[%c0_29, %c0_30] : memref<1x96xf32, #tpu.memory_space<vmem>>, vector<1x96xf32>
    %69 = vector.broadcast %68 : vector<1x96xf32> to vector<8x96xf32>
    %70 = arith.mulf %67, %69 : vector<8x96xf32>
    %c0_31 = arith.constant 0 : index
    %c0_32 = arith.constant 0 : index
    %c0_33 = arith.constant 0 : index
    %c0_34 = arith.constant 0 : index
    %71 = vector.load %arg6[%c0_31, %c0_32, %c0_33, %c0_34] : memref<3x8x8x32xf32, #tpu.memory_space<vmem>>, vector<3x8x8x32xf32>
    %c0_35 = arith.constant 0 : index
    %c0_36 = arith.constant 0 : index
    %c0_37 = arith.constant 0 : index
    %72 = vector.load %arg7[%c0_35, %c0_36, %c0_37] : memref<3x8x8xf32, #tpu.memory_space<vmem>>, vector<3x8x8xf32>
    %73 = vector.extract_strided_slice %70 {offsets = [0, 0], sizes = [8, 32], strides = [1, 1]} : vector<8x96xf32> to vector<8x32xf32>
    %74 = vector.extract_strided_slice %71 {offsets = [0, 0, 0, 0], sizes = [1, 8, 8, 32], strides = [1, 1, 1, 1]} : vector<3x8x8x32xf32> to vector<1x8x8x32xf32>
    %75 = vector.shape_cast %74 : vector<1x8x8x32xf32> to vector<8x8x32xf32>
    %76 = vector.shape_cast %73 : vector<8x32xf32> to vector<8x1x32xf32>
    %77 = vector.broadcast %76 : vector<8x1x32xf32> to vector<8x8x32xf32>
    %78 = arith.mulf %75, %77 : vector<8x8x32xf32>
    %cst_38 = arith.constant dense<0.000000e+00> : vector<8x8xf32>
    %79 = vector.multi_reduction <add>, %78, %cst_38 [2] : vector<8x8x32xf32> to vector<8x8xf32>
    %80 = vector.extract_strided_slice %72 {offsets = [0, 0, 0], sizes = [1, 8, 8], strides = [1, 1, 1]} : vector<3x8x8xf32> to vector<1x8x8xf32>
    %81 = vector.shape_cast %80 : vector<1x8x8xf32> to vector<8x8xf32>
    %82 = arith.mulf %79, %81 : vector<8x8xf32>
    %c0_39 = arith.constant 0 : index
    %83 = memref.load %arg0[%c0_39] : memref<3xf32, #tpu.memory_space<smem>>
    %c0_40 = arith.constant 0 : index
    %84 = memref.load %arg1[%c0_40] : memref<3xf32, #tpu.memory_space<smem>>
    %cst_41 = arith.constant 1.000000e+00 : f32
    %85 = arith.subf %cst_41, %84 : f32
    %86 = vector.broadcast %85 : f32 to vector<8x8xf32>
    %87 = arith.mulf %86, %82 : vector<8x8xf32>
    %88 = arith.mulf %87, %82 : vector<8x8xf32>
    %cst_42 = arith.constant 2.000000e+00 : f32
    %89 = vector.broadcast %cst_42 : f32 to vector<8x8xf32>
    %90 = arith.mulf %89, %82 : vector<8x8xf32>
    %91 = arith.subf %88, %90 : vector<8x8xf32>
    %92 = vector.shape_cast %91 : vector<8x8xf32> to vector<1x8x8xf32>
    %cst_43 = arith.constant dense<0.000000e+00> : vector<1xf32>
    %93 = vector.multi_reduction <add>, %92, %cst_43 [1, 2] : vector<1x8x8xf32> to vector<1xf32>
    %94 = vector.shape_cast %93 : vector<1xf32> to vector<1x1x1xf32>
    %95 = vector.extract %94[0, 0, 0] : f32 from vector<1x1x1xf32>
    %96 = arith.mulf %83, %95 : f32
    %97 = arith.addf %66, %96 : f32
    %98 = vector.extract_strided_slice %70 {offsets = [0, 32], sizes = [8, 32], strides = [1, 1]} : vector<8x96xf32> to vector<8x32xf32>
    %99 = vector.extract_strided_slice %71 {offsets = [1, 0, 0, 0], sizes = [1, 8, 8, 32], strides = [1, 1, 1, 1]} : vector<3x8x8x32xf32> to vector<1x8x8x32xf32>
    %100 = vector.shape_cast %99 : vector<1x8x8x32xf32> to vector<8x8x32xf32>
    %101 = vector.shape_cast %98 : vector<8x32xf32> to vector<8x1x32xf32>
    %102 = vector.broadcast %101 : vector<8x1x32xf32> to vector<8x8x32xf32>
    %103 = arith.mulf %100, %102 : vector<8x8x32xf32>
    %cst_44 = arith.constant dense<0.000000e+00> : vector<8x8xf32>
    %104 = vector.multi_reduction <add>, %103, %cst_44 [2] : vector<8x8x32xf32> to vector<8x8xf32>
    %105 = vector.extract_strided_slice %72 {offsets = [1, 0, 0], sizes = [1, 8, 8], strides = [1, 1, 1]} : vector<3x8x8xf32> to vector<1x8x8xf32>
    %106 = vector.shape_cast %105 : vector<1x8x8xf32> to vector<8x8xf32>
    %107 = arith.mulf %104, %106 : vector<8x8xf32>
    %c1_45 = arith.constant 1 : index
    %108 = memref.load %arg0[%c1_45] : memref<3xf32, #tpu.memory_space<smem>>
    %c1_46 = arith.constant 1 : index
    %109 = memref.load %arg1[%c1_46] : memref<3xf32, #tpu.memory_space<smem>>
    %cst_47 = arith.constant 1.000000e+00 : f32
    %110 = arith.subf %cst_47, %109 : f32
    %111 = vector.broadcast %110 : f32 to vector<8x8xf32>
    %112 = arith.mulf %111, %107 : vector<8x8xf32>
    %113 = arith.mulf %112, %107 : vector<8x8xf32>
    %cst_48 = arith.constant 2.000000e+00 : f32
    %114 = vector.broadcast %cst_48 : f32 to vector<8x8xf32>
    %115 = arith.mulf %114, %107 : vector<8x8xf32>
    %116 = arith.subf %113, %115 : vector<8x8xf32>
    %117 = vector.shape_cast %116 : vector<8x8xf32> to vector<1x8x8xf32>
    %cst_49 = arith.constant dense<0.000000e+00> : vector<1xf32>
    %118 = vector.multi_reduction <add>, %117, %cst_49 [1, 2] : vector<1x8x8xf32> to vector<1xf32>
    %119 = vector.shape_cast %118 : vector<1xf32> to vector<1x1x1xf32>
    %120 = vector.extract %119[0, 0, 0] : f32 from vector<1x1x1xf32>
    %121 = arith.mulf %108, %120 : f32
    %122 = arith.addf %97, %121 : f32
    %123 = vector.extract_strided_slice %70 {offsets = [0, 64], sizes = [8, 32], strides = [1, 1]} : vector<8x96xf32> to vector<8x32xf32>
    %124 = vector.extract_strided_slice %71 {offsets = [2, 0, 0, 0], sizes = [1, 8, 8, 32], strides = [1, 1, 1, 1]} : vector<3x8x8x32xf32> to vector<1x8x8x32xf32>
    %125 = vector.shape_cast %124 : vector<1x8x8x32xf32> to vector<8x8x32xf32>
    %126 = vector.shape_cast %123 : vector<8x32xf32> to vector<8x1x32xf32>
    %127 = vector.broadcast %126 : vector<8x1x32xf32> to vector<8x8x32xf32>
    %128 = arith.mulf %125, %127 : vector<8x8x32xf32>
    %cst_50 = arith.constant dense<0.000000e+00> : vector<8x8xf32>
    %129 = vector.multi_reduction <add>, %128, %cst_50 [2] : vector<8x8x32xf32> to vector<8x8xf32>
    %130 = vector.extract_strided_slice %72 {offsets = [2, 0, 0], sizes = [1, 8, 8], strides = [1, 1, 1]} : vector<3x8x8xf32> to vector<1x8x8xf32>
    %131 = vector.shape_cast %130 : vector<1x8x8xf32> to vector<8x8xf32>
    %132 = arith.mulf %129, %131 : vector<8x8xf32>
    %c2_51 = arith.constant 2 : index
    %133 = memref.load %arg0[%c2_51] : memref<3xf32, #tpu.memory_space<smem>>
    %c2_52 = arith.constant 2 : index
    %134 = memref.load %arg1[%c2_52] : memref<3xf32, #tpu.memory_space<smem>>
    %cst_53 = arith.constant 1.000000e+00 : f32
    %135 = arith.subf %cst_53, %134 : f32
    %136 = vector.broadcast %135 : f32 to vector<8x8xf32>
    %137 = arith.mulf %136, %132 : vector<8x8xf32>
    %138 = arith.mulf %137, %132 : vector<8x8xf32>
    %cst_54 = arith.constant 2.000000e+00 : f32
    %139 = vector.broadcast %cst_54 : f32 to vector<8x8xf32>
    %140 = arith.mulf %139, %132 : vector<8x8xf32>
    %141 = arith.subf %138, %140 : vector<8x8xf32>
    %142 = vector.shape_cast %141 : vector<8x8xf32> to vector<1x8x8xf32>
    %cst_55 = arith.constant dense<0.000000e+00> : vector<1xf32>
    %143 = vector.multi_reduction <add>, %142, %cst_55 [1, 2] : vector<1x8x8xf32> to vector<1xf32>
    %144 = vector.shape_cast %143 : vector<1xf32> to vector<1x1x1xf32>
    %145 = vector.extract %144[0, 0, 0] : f32 from vector<1x1x1xf32>
    %146 = arith.mulf %133, %145 : f32
    %147 = arith.addf %122, %146 : f32
    %c0_56 = arith.constant 0 : index
    %c0_57 = arith.constant 0 : index
    %148 = vector.load %arg2[%c0_56, %c0_57] : memref<8x96xf32, #tpu.memory_space<vmem>>, vector<8x96xf32>
    %c0_58 = arith.constant 0 : index
    %c0_59 = arith.constant 0 : index
    %149 = vector.load %arg2[%c0_58, %c0_59] : memref<8x96xf32, #tpu.memory_space<vmem>>, vector<8x96xf32>
    %150 = arith.mulf %148, %149 : vector<8x96xf32>
    %151 = vector.shape_cast %150 : vector<8x96xf32> to vector<1x8x96xf32>
    %cst_60 = arith.constant dense<0.000000e+00> : vector<1xf32>
    %152 = vector.multi_reduction <add>, %151, %cst_60 [1, 2] : vector<1x8x96xf32> to vector<1xf32>
    %153 = vector.shape_cast %152 : vector<1xf32> to vector<1x1x1xf32>
    %154 = vector.extract %153[0, 0, 0] : f32 from vector<1x1x1xf32>
    %c0_61 = arith.constant 0 : index
    %c0_62 = arith.constant 0 : index
    %155 = vector.load %arg3[%c0_61, %c0_62] : memref<17x96xf32, #tpu.memory_space<vmem>>, vector<17x96xf32>
    %c0_63 = arith.constant 0 : index
    %c0_64 = arith.constant 0 : index
    %156 = vector.load %arg3[%c0_63, %c0_64] : memref<17x96xf32, #tpu.memory_space<vmem>>, vector<17x96xf32>
    %157 = arith.mulf %155, %156 : vector<17x96xf32>
    %158 = vector.shape_cast %157 : vector<17x96xf32> to vector<1x17x96xf32>
    %cst_65 = arith.constant dense<0.000000e+00> : vector<1xf32>
    %159 = vector.multi_reduction <add>, %158, %cst_65 [1, 2] : vector<1x17x96xf32> to vector<1xf32>
    %160 = vector.shape_cast %159 : vector<1xf32> to vector<1x1x1xf32>
    %161 = vector.extract %160[0, 0, 0] : f32 from vector<1x1x1xf32>
    %162 = arith.addf %154, %161 : f32
    %163 = tpu.iota {dimensions = array<i32: 1>} : vector<1x128xi32>
    %c0_i32_66 = arith.constant 0 : i32
    %164 = vector.broadcast %c0_i32_66 : i32 to vector<1x128xi32>
    %165 = arith.cmpi eq, %163, %164 : vector<1x128xi32>
    %cst_67 = arith.constant 0.000000e+00 : f32
    %166 = vector.broadcast %147 : f32 to vector<1x128xf32>
    %167 = vector.broadcast %cst_67 : f32 to vector<1x128xf32>
    %168 = arith.select %165, %166, %167 : vector<1x128xi1>, vector<1x128xf32>
    %c1_i32 = arith.constant 1 : i32
    %169 = vector.broadcast %c1_i32 : i32 to vector<1x128xi32>
    %170 = arith.cmpi eq, %163, %169 : vector<1x128xi32>
    %cst_68 = arith.constant 0.000000e+00 : f32
    %171 = vector.broadcast %162 : f32 to vector<1x128xf32>
    %172 = vector.broadcast %cst_68 : f32 to vector<1x128xf32>
    %173 = arith.select %170, %171, %172 : vector<1x128xi1>, vector<1x128xf32>
    %174 = arith.addf %168, %173 : vector<1x128xf32>
    %c0_69 = arith.constant 0 : index
    %c0_70 = arith.constant 0 : index
    %175 = vector.load %arg8[%c0_69, %c0_70] : memref<1x128xf32, #tpu.memory_space<vmem>>, vector<1x128xf32>
    tpu.vector_store %arg8[%c0_69, %c0_70], %174 {strides = array<i32>} : memref<1x128xf32, #tpu.memory_space<vmem>>, vector<1x128xf32>,
    return
  }
}

</mosaic_0001>

<llo_original>
// kernel: tpu_custom_call.1
$region0: #{tpu_custom_call.1}
  #allocation0 [shape = 'u32[]', space=smem, size = 0x4, offset = 0x4, fixed_abs, tag = 'smem constant byte address 0x4 - core index']
  #allocation1 [shape = 'u32[72,128]{1,0:T(1,128)}', space=vmem, size = 0x9000, scoped, tag = 'internal scratch']
  %s0 = inlined_call_operand.hbm [shape: f32[3], index: 0, kind: input, shape index: {}]
  %s1 = inlined_call_operand.hbm [shape: f32[3], index: 1, kind: input, shape index: {}]
  %s2 = inlined_call_operand.hbm [shape: f32[8,96], index: 2, kind: input, shape index: {}]
  %s3 = inlined_call_operand.hbm [shape: f32[17,96], index: 3, kind: input, shape index: {}]
  %s4 = inlined_call_operand.vmem [shape: f32[2,96], index: 4, kind: input, shape index: {}]
  %s5 = inlined_call_operand.vmem [shape: f32[1,96], index: 5, kind: input, shape index: {}]
  %s6 = inlined_call_operand.hbm [shape: f32[3,8,8,32], index: 6, kind: input, shape index: {}]
  %s7 = inlined_call_operand.hbm [shape: f32[3,8,8], index: 7, kind: input, shape index: {}]
  %s8 = inlined_call_operand.hbm [shape: f32[1,128], index: 8, kind: output, shape index: {}]
  %s9 = sld [smem:[#allocation0]]
  $region66: #{tpu_custom_call.1} parent=0
    _
  %s11 = ssub.s32 1, %s9
  %s12 = scalar_select 0, %s11, %s9
  $region1: #{tpu_custom_call.1} parent=0
    #allocation2 [shape = 'u8[512]{0}', space=smem, size = 0x200, scoped, tag = 'input window, operand 0, single buffered']
    #allocation3 [shape = 's32[1]{0}', space=sflag, size = 0x4, scoped, tag = 'scoped memory for tpu_custom_call.1']
    #allocation4 [shape = 's32[1]{0}', space=sflag, size = 0x4, scoped, tag = 'scoped memory for tpu_custom_call.1']
    #allocation5 [shape = 's32[1]{0}', space=sflag, size = 0x4, scoped, tag = 'scoped memory for tpu_custom_call.1']
    #allocation6 [shape = 'u8[512]{0}', space=smem, size = 0x200, scoped, tag = 'input window, operand 1, single buffered']
    #allocation7 [shape = 's32[1]{0}', space=sflag, size = 0x4, scoped, tag = 'scoped memory for tpu_custom_call.1']
    #allocation8 [shape = 'u8[4096]{0}', space=vmem, size = 0x1000, scoped, tag = 'input window, operand 2, single buffered']
    #allocation9 [shape = 'u8[12288]{0}', space=vmem, size = 0x3000, scoped, tag = 'input window, operand 3, single buffered']
    #allocation10 [shape = 's32[1]{0}', space=sflag, size = 0x4, scoped, tag = 'scoped memory for tpu_custom_call.1']
    #allocation11 [shape = 'u8[98304]{0}', space=vmem, size = 0x18000, scoped, tag = 'input window, operand 6, single buffered']
    #allocation12 [shape = 'u8[12288]{0}', space=vmem, size = 0x3000, scoped, tag = 'input window, operand 7, single buffered']
    #allocation13 [shape = 's32[1]{0}', space=sflag, size = 0x4, scoped, tag = 'scoped memory for tpu_custom_call.1']
    #allocation14 [shape = 'u8[512]{0}', space=vmem, size = 0x400, scoped, tag = 'output window, operand 0, single buffered']
    %13 = vsyncpa [#allocation5], 0
    %14 = vsyncpa [#allocation7], 0
    %15 = vsyncpa [#allocation3], 0
    %16 = vsyncpa [#allocation10], 0
    %17 = vsyncpa [#allocation13], 0
    %18 = vsyncpa [#allocation4], 0
    // Predicated region
    $region2: #{tpu_custom_call.1} parent=1 // pred_check
      _
    $region3: #{tpu_custom_call.1} parent=1 // pred_check_branch
      %20 = sbr.rel (0) target = $region5
    $region4: #{tpu_custom_call.1} parent=1 // pred_region
      %22 = vsyncadd [#allocation5], 0
      %s24 = sshll.u32 %s0, 4
      %s25 = int_to_ptr.hbm [resolvable:$true] %s24
      %27 = dma.hbm_to_smem %s25, 16, [#allocation2], [#allocation5]
    $region5: #{tpu_custom_call.1} parent=1 // pred_fallthru
      _
    // Predicated region
    $region6: #{tpu_custom_call.1} parent=1 // pred_check
      _
    $region7: #{tpu_custom_call.1} parent=1 // pred_check_branch
      %29 = sbr.rel (0) target = $region9
    $region8: #{tpu_custom_call.1} parent=1 // pred_region
      %31 = vsyncadd [#allocation7], 0
      %s33 = sshll.u32 %s1, 4
      %s34 = int_to_ptr.hbm [resolvable:$true] %s33
      %36 = dma.hbm_to_smem %s34, 16, [#allocation6], [#allocation7]
    $region9: #{tpu_custom_call.1} parent=1 // pred_fallthru
      _
    // Predicated region
    $region10: #{tpu_custom_call.1} parent=1 // pred_check
      _
    $region11: #{tpu_custom_call.1} parent=1 // pred_check_branch
      %38 = sbr.rel (0) target = $region13
    $region12: #{tpu_custom_call.1} parent=1 // pred_region
      %40 = vsyncadd [#allocation3], 0
      %s42 = sshll.u32 %s2, 4
      %s43 = int_to_ptr.hbm [resolvable:$true] %s42
      %s44 = sshll.u32 [#allocation8], 4
      %s45 = int_to_ptr.vmem [resolvable:$true] %s44
      %47 = dma.hbm_to_vmem [thread:$0]  %s43, 128, %s45, [#allocation3]
    $region13: #{tpu_custom_call.1} parent=1 // pred_fallthru
      _
    // Predicated region
    $region14: #{tpu_custom_call.1} parent=1 // pred_check
      _
    $region15: #{tpu_custom_call.1} parent=1 // pred_check_branch
      %49 = sbr.rel (0) target = $region17
    $region16: #{tpu_custom_call.1} parent=1 // pred_region
      %51 = vsyncadd [#allocation10], 0
      %s52 = sshll.u32 %s3, 4
      %s53 = int_to_ptr.hbm [resolvable:$true] %s52
      %s54 = sshll.u32 [#allocation9], 4
      %s55 = int_to_ptr.vmem [resolvable:$true] %s54
      %60 = dma.hbm_to_vmem [thread:$0]  %s53, 384, %s55, [#allocation10], 128, 128, 8
    $region17: #{tpu_custom_call.1} parent=1 // pred_fallthru
      _
    // Predicated region
    $region18: #{tpu_custom_call.1} parent=1 // pred_check
      _
    $region19: #{tpu_custom_call.1} parent=1 // pred_check_branch
      %62 = sbr.rel (0) target = $region21
    $region20: #{tpu_custom_call.1} parent=1 // pred_region
      _
    $region21: #{tpu_custom_call.1} parent=1 // pred_fallthru
      _
    // Predicated region
    $region22: #{tpu_custom_call.1} parent=1 // pred_check
      _
    $region23: #{tpu_custom_call.1} parent=1 // pred_check_branch
      %64 = sbr.rel (0) target = $region25
    $region24: #{tpu_custom_call.1} parent=1 // pred_region
      _
    $region25: #{tpu_custom_call.1} parent=1 // pred_fallthru
      _
    // Predicated region
    $region26: #{tpu_custom_call.1} parent=1 // pred_check
      _
    $region27: #{tpu_custom_call.1} parent=1 // pred_check_branch
      %66 = sbr.rel (0) target = $region29
    $region28: #{tpu_custom_call.1} parent=1 // pred_region
      %68 = vsyncadd [#allocation10], 0
      %s69 = sshll.u32 %s6, 4
      %s70 = int_to_ptr.hbm [resolvable:$true] %s69
      %s71 = sshll.u32 [#allocation11], 4
      %s72 = int_to_ptr.vmem [resolvable:$true] %s71
      %77 = dma.hbm_to_vmem [thread:$0]  %s70, 3072, %s72, [#allocation10], 128, 128, 8
    $region29: #{tpu_custom_call.1} parent=1 // pred_fallthru
      _
    // Predicated region
    $region30: #{tpu_custom_call.1} parent=1 // pred_check
      _
    $region31: #{tpu_custom_call.1} parent=1 // pred_check_branch
      %79 = sbr.rel (0) target = $region33
    $region32: #{tpu_custom_call.1} parent=1 // pred_region
      %81 = vsyncadd [#allocation13], 0
      %s82 = sshll.u32 %s7, 4
      %s83 = int_to_ptr.hbm [resolvable:$true] %s82
      %s84 = sshll.u32 [#allocation12], 4
      %s85 = int_to_ptr.vmem [resolvable:$true] %s84
      %90 = dma.hbm_to_vmem [thread:$0]  %s83, 384, %s85, [#allocation13], 128, 128, 8
    $region33: #{tpu_custom_call.1} parent=1 // pred_fallthru
      _
    // Predicated region
    $region34: #{tpu_custom_call.1} parent=1 // pred_check
      _
    $region35: #{tpu_custom_call.1} parent=1 // pred_check_branch
      %92 = sbr.rel (0) target = $region37
    $region36: #{tpu_custom_call.1} parent=1 // pred_region
      %94 = dma.done [#allocation5], 16
    $region37: #{tpu_custom_call.1} parent=1 // pred_fallthru
      _
    // Predicated region
    $region38: #{tpu_custom_call.1} parent=1 // pred_check
      _
    $region39: #{tpu_custom_call.1} parent=1 // pred_check_branch
      %96 = sbr.rel (0) target = $region41
    $region40: #{tpu_custom_call.1} parent=1 // pred_region
      %98 = dma.done [#allocation7], 16
    $region41: #{tpu_custom_call.1} parent=1 // pred_fallthru
      _
    // Predicated region
    $region42: #{tpu_custom_call.1} parent=1 // pred_check
      _
    $region43: #{tpu_custom_call.1} parent=1 // pred_check_branch
      %100 = sbr.rel (0) target = $region45
    $region44: #{tpu_custom_call.1} parent=1 // pred_region
      %102 = dma.done [#allocation3], 128
    $region45: #{tpu_custom_call.1} parent=1 // pred_fallthru
      _
    // Predicated region
    $region46: #{tpu_custom_call.1} parent=1 // pred_check
      _
    $region47: #{tpu_custom_call.1} parent=1 // pred_check_branch
      %104 = sbr.rel (0) target = $region49
    $region48: #{tpu_custom_call.1} parent=1 // pred_region
      %106 = dma.done [#allocation10], 384
    $region49: #{tpu_custom_call.1} parent=1 // pred_fallthru
      _
    // Predicated region
    $region50: #{tpu_custom_call.1} parent=1 // pred_check
      _
    $region51: #{tpu_custom_call.1} parent=1 // pred_check_branch
      %108 = sbr.rel (0) target = $region53
    $region52: #{tpu_custom_call.1} parent=1 // pred_region
      %110 = dma.done [#allocation10], 3072
    $region53: #{tpu_custom_call.1} parent=1 // pred_fallthru
      _
    // Predicated region
    $region54: #{tpu_custom_call.1} parent=1 // pred_check
      _
    $region55: #{tpu_custom_call.1} parent=1 // pred_check_branch
      %112 = sbr.rel (0) target = $region57
    $region56: #{tpu_custom_call.1} parent=1 // pred_region
      %114 = dma.done [#allocation13], 384
    $region57: #{tpu_custom_call.1} parent=1 // pred_fallthru
      _
    %115 = sfence
    %v116 = vld [vmem:[#allocation9] sm:$0xff]
    %v117 = vld [vmem:[#allocation9 + $0x8] sm:$0xff]
    %v118 = vld [vmem:[#allocation9 + $0x10] sm:$0x1]
    %119 = vxpose.xlu0.b32.start [1/16] %v116, 128
    %120 = vxpose.xlu0.b32.cont [2/16] %v117, 128
    %121 = vxpose.xlu0.b32.cont [3/16] %v118, 128
    %122 = vxpose.xlu0.b32.cont [4/16] 0.0, 128
    %123 = vxpose.xlu0.b32.cont [5/16] 0.0, 128
    %124 = vxpose.xlu0.b32.cont [6/16] 0.0, 128
    %125 = vxpose.xlu0.b32.cont [7/16] 0.0, 128
    %126 = vxpose.xlu0.b32.cont [8/16] 0.0, 128
    %127 = vxpose.xlu0.b32.cont [9/16] 0.0, 128
    %128 = vxpose.xlu0.b32.cont [10/16] 0.0, 128
    %129 = vxpose.xlu0.b32.cont [11/16] 0.0, 128
    %130 = vxpose.xlu0.b32.cont [12/16] 0.0, 128
    %131 = vxpose.xlu0.b32.cont [13/16] 0.0, 128
    %132 = vxpose.xlu0.b32.cont [14/16] 0.0, 128
    %133 = vxpose.xlu0.b32.cont [15/16] 0.0, 128
    %134 = vxpose.xlu0.b32.end [16/16] 0.0, 128
    %v135 = vpop.trf.xlu0
    %v136 = vpop.trf.xlu0
    %v137 = vpop.trf.xlu0
    %v138 = vpop.trf.xlu0
    %v139 = vpop.trf.xlu0
    %v140 = vpop.trf.xlu0
    %v141 = vpop.trf.xlu0
    %v142 = vpop.trf.xlu0
    %v143 = vpop.trf.xlu0
    %v144 = vpop.trf.xlu0
    %v145 = vpop.trf.xlu0
    %v146 = vpop.trf.xlu0
    %v147 = vpop.trf.xlu0
    %v148 = vpop.trf.xlu0
    %v149 = vpop.trf.xlu0
    %v150 = vpop.trf.xlu0
    %vm151 = vcmask 138240
    %v153 = vsel %vm151, %v135, 0
    %v156 = vsel %vm151, %v136, 0
    %v159 = vsel %vm151, %v137, 0
    %v162 = vsel %vm151, %v138, 0
    %v165 = vsel %vm151, %v139, 0
    %v168 = vsel %vm151, %v140, 0
    %v171 = vsel %vm151, %v141, 0
    %v174 = vsel %vm151, %v142, 0
    %v177 = vsel %vm151, %v143, 0
    %v180 = vsel %vm151, %v144, 0
    %v183 = vsel %vm151, %v145, 0
    %v186 = vsel %vm151, %v146, 0
    %vm188 = vcmask 1040384
    %v190 = vsel %vm188, %v118, 0
    %192 = vmatpush.msra.mxu0 0.0
    %193 = vmatpush.msra.mxu0 0.0
    %194 = vmatpush.msra.mxu0 0.0
    %195 = vmatpush.msra.mxu0 0.0
    %196 = vmatpush.msra.mxu0 0.0
    %197 = vmatpush.msra.mxu0 0.0
    %198 = vmatpush.msra.mxu0 0.0
    %199 = vmatpush.msra.mxu0 0.0
    %200 = vmatpush.msra.mxu0 0.0
    %201 = vmatpush.msra.mxu0 0.0
    %202 = vmatpush.msra.mxu0 0.0
    %203 = vmatpush.msra.mxu0 0.0
    %204 = vmatpush.msra.mxu0 0.0
    %205 = vmatpush.msra.mxu0 %v190
    %206 = vmatpush.msra.mxu0 %v117
    %207 = vmatpush.msra.mxu0 %v116
    %208 = vmatmul.f32.gmra.mxu0 %v153
    %v209 = vpop.f32.mrf.mxu0
    %v210 = vadd.f32 0.0, %v209
    %211 = vmatmul.f32.gmra.mxu0 %v156
    %v212 = vpop.f32.mrf.mxu0
    %v213 = vadd.f32 0.0, %v212
    %214 = vmatmul.f32.gmra.mxu0 %v159
    %v215 = vpop.f32.mrf.mxu0
    %v216 = vadd.f32 0.0, %v215
    %217 = vmatmul.f32.gmra.mxu0 %v162
    %v218 = vpop.f32.mrf.mxu0
    %v219 = vadd.f32 0.0, %v218
    %220 = vmatmul.f32.gmra.mxu0 %v165
    %v221 = vpop.f32.mrf.mxu0
    %v222 = vadd.f32 0.0, %v221
    %223 = vmatmul.f32.gmra.mxu0 %v168
    %v224 = vpop.f32.mrf.mxu0
    %v225 = vadd.f32 0.0, %v224
    %226 = vmatmul.f32.gmra.mxu0 %v171
    %v227 = vpop.f32.mrf.mxu0
    %v228 = vadd.f32 0.0, %v227
    %229 = vmatmul.f32.gmra.mxu0 %v174
    %v230 = vpop.f32.mrf.mxu0
    %v231 = vadd.f32 0.0, %v230
    %232 = vmatmul.f32.gmra.mxu0 %v177
    %v233 = vpop.f32.mrf.mxu0
    %v234 = vadd.f32 0.0, %v233
    %235 = vmatmul.f32.gmra.mxu0 %v180
    %v236 = vpop.f32.mrf.mxu0
    %v237 = vadd.f32 0.0, %v236
    %238 = vmatmul.f32.gmra.mxu0 %v183
    %v239 = vpop.f32.mrf.mxu0
    %v240 = vadd.f32 0.0, %v239
    %241 = vmatmul.f32.gmra.mxu0 %v186
    %v242 = vpop.f32.mrf.mxu0
    %v243 = vadd.f32 0.0, %v242
    %244 = vdwg.mxu0
    %v245 = vld [vmem:[#allocation8] sm:$0xff]
    %246 = vxpose.xlu0.b32.start [1/16] %v245, 128
    %247 = vxpose.xlu0.b32.cont [2/16] 0.0, 128
    %248 = vxpose.xlu0.b32.cont [3/16] 0.0, 128
    %249 = vxpose.xlu0.b32.cont [4/16] 0.0, 128
    %250 = vxpose.xlu0.b32.cont [5/16] 0.0, 128
    %251 = vxpose.xlu0.b32.cont [6/16] 0.0, 128
    %252 = vxpose.xlu0.b32.cont [7/16] 0.0, 128
    %253 = vxpose.xlu0.b32.cont [8/16] 0.0, 128
    %254 = vxpose.xlu0.b32.cont [9/16] 0.0, 128
    %255 = vxpose.xlu0.b32.cont [10/16] 0.0, 128
    %256 = vxpose.xlu0.b32.cont [11/16] 0.0, 128
    %257 = vxpose.xlu0.b32.cont [12/16] 0.0, 128
    %258 = vxpose.xlu0.b32.cont [13/16] 0.0, 128
    %259 = vxpose.xlu0.b32.cont [14/16] 0.0, 128
    %260 = vxpose.xlu0.b32.cont [15/16] 0.0, 128
    %261 = vxpose.xlu0.b32.end [16/16] 0.0, 128
    %v262 = vpop.trf.xlu0
    %v263 = vpop.trf.xlu0
    %v264 = vpop.trf.xlu0
    %v265 = vpop.trf.xlu0
    %v266 = vpop.trf.xlu0
    %v267 = vpop.trf.xlu0
    %v268 = vpop.trf.xlu0
    %v269 = vpop.trf.xlu0
    %v270 = vpop.trf.xlu0
    %v271 = vpop.trf.xlu0
    %v272 = vpop.trf.xlu0
    %v273 = vpop.trf.xlu0
    %v274 = vpop.trf.xlu0
    %v275 = vpop.trf.xlu0
    %v276 = vpop.trf.xlu0
    %v277 = vpop.trf.xlu0
    %vm278 = vcmask 64512
    %v280 = vsel %vm278, %v262, 0
    %v283 = vsel %vm278, %v263, 0
    %v286 = vsel %vm278, %v264, 0
    %v289 = vsel %vm278, %v265, 0
    %v292 = vsel %vm278, %v266, 0
    %v295 = vsel %vm278, %v267, 0
    %v298 = vsel %vm278, %v268, 0
    %v301 = vsel %vm278, %v269, 0
    %v304 = vsel %vm278, %v270, 0
    %v307 = vsel %vm278, %v271, 0
    %v310 = vsel %vm278, %v272, 0
    %v313 = vsel %vm278, %v273, 0
    %315 = vmatpush.msra.mxu0 0.0
    %316 = vmatpush.msra.mxu0 0.0
    %317 = vmatpush.msra.mxu0 0.0
    %318 = vmatpush.msra.mxu0 0.0
    %319 = vmatpush.msra.mxu0 0.0
    %320 = vmatpush.msra.mxu0 0.0
    %321 = vmatpush.msra.mxu0 0.0
    %322 = vmatpush.msra.mxu0 0.0
    %323 = vmatpush.msra.mxu0 0.0
    %324 = vmatpush.msra.mxu0 0.0
    %325 = vmatpush.msra.mxu0 0.0
    %326 = vmatpush.msra.mxu0 0.0
    %327 = vmatpush.msra.mxu0 0.0
    %328 = vmatpush.msra.mxu0 0.0
    %329 = vmatpush.msra.mxu0 0.0
    %330 = vmatpush.msra.mxu0 %v245
    %331 = vmatmul.f32.gmra.mxu0 %v280
    %v332 = vpop.f32.mrf.mxu0
    %v333 = vadd.f32 0.0, %v332
    %334 = vmatmul.f32.gmra.mxu0 %v283
    %v335 = vpop.f32.mrf.mxu0
    %v336 = vadd.f32 0.0, %v335
    %337 = vmatmul.f32.gmra.mxu0 %v286
    %v338 = vpop.f32.mrf.mxu0
    %v339 = vadd.f32 0.0, %v338
    %340 = vmatmul.f32.gmra.mxu0 %v289
    %v341 = vpop.f32.mrf.mxu0
    %v342 = vadd.f32 0.0, %v341
    %343 = vmatmul.f32.gmra.mxu0 %v292
    %v344 = vpop.f32.mrf.mxu0
    %v345 = vadd.f32 0.0, %v344
    %346 = vmatmul.f32.gmra.mxu0 %v295
    %v347 = vpop.f32.mrf.mxu0
    %v348 = vadd.f32 0.0, %v347
    %349 = vmatmul.f32.gmra.mxu0 %v298
    %v350 = vpop.f32.mrf.mxu0
    %v351 = vadd.f32 0.0, %v350
    %352 = vmatmul.f32.gmra.mxu0 %v301
    %v353 = vpop.f32.mrf.mxu0
    %v354 = vadd.f32 0.0, %v353
    %355 = vmatmul.f32.gmra.mxu0 %v304
    %v356 = vpop.f32.mrf.mxu0
    %v357 = vadd.f32 0.0, %v356
    %358 = vmatmul.f32.gmra.mxu0 %v307
    %v359 = vpop.f32.mrf.mxu0
    %v360 = vadd.f32 0.0, %v359
    %361 = vmatmul.f32.gmra.mxu0 %v310
    %v362 = vpop.f32.mrf.mxu0
    %v363 = vadd.f32 0.0, %v362
    %364 = vmatmul.f32.gmra.mxu0 %v313
    %v365 = vpop.f32.mrf.mxu0
    %v366 = vadd.f32 0.0, %v365
    %367 = vdwg.mxu0
    %v368 = vld [vmem:[%s4] sm:$0x3]
    %369 = vxpose.xlu0.b32.start [1/16] %v368, 128
    %370 = vxpose.xlu0.b32.cont [2/16] 0.0, 128
    %371 = vxpose.xlu0.b32.cont [3/16] 0.0, 128
    %372 = vxpose.xlu0.b32.cont [4/16] 0.0, 128
    %373 = vxpose.xlu0.b32.cont [5/16] 0.0, 128
    %374 = vxpose.xlu0.b32.cont [6/16] 0.0, 128
    %375 = vxpose.xlu0.b32.cont [7/16] 0.0, 128
    %376 = vxpose.xlu0.b32.cont [8/16] 0.0, 128
    %377 = vxpose.xlu0.b32.cont [9/16] 0.0, 128
    %378 = vxpose.xlu0.b32.cont [10/16] 0.0, 128
    %379 = vxpose.xlu0.b32.cont [11/16] 0.0, 128
    %380 = vxpose.xlu0.b32.cont [12/16] 0.0, 128
    %381 = vxpose.xlu0.b32.cont [13/16] 0.0, 128
    %382 = vxpose.xlu0.b32.cont [14/16] 0.0, 128
    %383 = vxpose.xlu0.b32.cont [15/16] 0.0, 128
    %384 = vxpose.xlu0.b32.end [16/16] 0.0, 128
    %v385 = vpop.trf.xlu0
    %v386 = vpop.trf.xlu0
    %v387 = vpop.trf.xlu0
    %v388 = vpop.trf.xlu0
    %v389 = vpop.trf.xlu0
    %v390 = vpop.trf.xlu0
    %v391 = vpop.trf.xlu0
    %v392 = vpop.trf.xlu0
    %v393 = vpop.trf.xlu0
    %v394 = vpop.trf.xlu0
    %v395 = vpop.trf.xlu0
    %v396 = vpop.trf.xlu0
    %v397 = vpop.trf.xlu0
    %v398 = vpop.trf.xlu0
    %v399 = vpop.trf.xlu0
    %v400 = vpop.trf.xlu0
    %vm401 = vcmask 15360
    %v403 = vsel %vm401, %v385, 0
    %v406 = vsel %vm401, %v386, 0
    %v409 = vsel %vm401, %v387, 0
    %v412 = vsel %vm401, %v388, 0
    %v415 = vsel %vm401, %v389, 0
    %v418 = vsel %vm401, %v390, 0
    %v421 = vsel %vm401, %v391, 0
    %v424 = vsel %vm401, %v392, 0
    %v427 = vsel %vm401, %v393, 0
    %v430 = vsel %vm401, %v394, 0
    %v433 = vsel %vm401, %v395, 0
    %v436 = vsel %vm401, %v396, 0
    %vm438 = vcmask 1041408
    %v440 = vsel %vm438, %v368, 0
    %442 = vmatpush.msra.mxu0 0.0
    %443 = vmatpush.msra.mxu0 0.0
    %444 = vmatpush.msra.mxu0 0.0
    %445 = vmatpush.msra.mxu0 0.0
    %446 = vmatpush.msra.mxu0 0.0
    %447 = vmatpush.msra.mxu0 0.0
    %448 = vmatpush.msra.mxu0 0.0
    %449 = vmatpush.msra.mxu0 0.0
    %450 = vmatpush.msra.mxu0 0.0
    %451 = vmatpush.msra.mxu0 0.0
    %452 = vmatpush.msra.mxu0 0.0
    %453 = vmatpush.msra.mxu0 0.0
    %454 = vmatpush.msra.mxu0 0.0
    %455 = vmatpush.msra.mxu0 0.0
    %456 = vmatpush.msra.mxu0 0.0
    %457 = vmatpush.msra.mxu0 %v440
    %458 = vmatmul.f32.gmra.mxu0 %v403
    %v459 = vpop.f32.mrf.mxu0
    %v460 = vadd.f32 0.0, %v459
    %461 = vmatmul.f32.gmra.mxu0 %v406
    %v462 = vpop.f32.mrf.mxu0
    %v463 = vadd.f32 0.0, %v462
    %464 = vmatmul.f32.gmra.mxu0 %v409
    %v465 = vpop.f32.mrf.mxu0
    %v466 = vadd.f32 0.0, %v465
    %467 = vmatmul.f32.gmra.mxu0 %v412
    %v468 = vpop.f32.mrf.mxu0
    %v469 = vadd.f32 0.0, %v468
    %470 = vmatmul.f32.gmra.mxu0 %v415
    %v471 = vpop.f32.mrf.mxu0
    %v472 = vadd.f32 0.0, %v471
    %473 = vmatmul.f32.gmra.mxu0 %v418
    %v474 = vpop.f32.mrf.mxu0
    %v475 = vadd.f32 0.0, %v474
    %476 = vmatmul.f32.gmra.mxu0 %v421
    %v477 = vpop.f32.mrf.mxu0
    %v478 = vadd.f32 0.0, %v477
    %479 = vmatmul.f32.gmra.mxu0 %v424
    %v480 = vpop.f32.mrf.mxu0
    %v481 = vadd.f32 0.0, %v480
    %482 = vmatmul.f32.gmra.mxu0 %v427
    %v483 = vpop.f32.mrf.mxu0
    %v484 = vadd.f32 0.0, %v483
    %485 = vmatmul.f32.gmra.mxu0 %v430
    %v486 = vpop.f32.mrf.mxu0
    %v487 = vadd.f32 0.0, %v486
    %488 = vmatmul.f32.gmra.mxu0 %v433
    %v489 = vpop.f32.mrf.mxu0
    %v490 = vadd.f32 0.0, %v489
    %491 = vmatmul.f32.gmra.mxu0 %v436
    %v492 = vpop.f32.mrf.mxu0
    %v493 = vadd.f32 0.0, %v492
    %494 = vdwg.mxu0
    %v495 = vlaneseq
    %v496 = vshrl.u32 %v495, 7
    %v497 = vadd.s32 %v496, 8
    %v498 = vadd.s32 %v496, 16
    %v499 = vadd.s32 %v496, 24
    %v500 = vadd.s32 %v496, 32
    %v501 = vadd.s32 %v496, 40
    %v502 = vadd.s32 %v496, 48
    %v503 = vadd.s32 %v496, 56
    %v504 = vadd.s32 %v496, 64
    %v505 = vadd.s32 %v496, 72
    %v506 = vadd.s32 %v496, 80
    %v507 = vadd.s32 %v496, 88
    %v508 = vlaneseq
    %v509 = vand.u32 %v508, 127
    %vm510 = vcmp.ge.s32.totalorder %v496, 0
    %vm511 = vcmp.ge.s32.totalorder %v497, 0
    %vm512 = vcmp.ge.s32.totalorder %v498, 0
    %vm513 = vcmp.ge.s32.totalorder %v499, 0
    %vm514 = vcmp.ge.s32.totalorder %v500, 0
    %vm515 = vcmp.ge.s32.totalorder %v501, 0
    %vm516 = vcmp.ge.s32.totalorder %v502, 0
    %vm517 = vcmp.ge.s32.totalorder %v503, 0
    %vm518 = vcmp.ge.s32.totalorder %v504, 0
    %vm519 = vcmp.ge.s32.totalorder %v505, 0
    %vm520 = vcmp.ge.s32.totalorder %v506, 0
    %vm521 = vcmp.ge.s32.totalorder %v507, 0
    %vm522 = vcmp.lt.s32.totalorder %v496, 32
    %vm523 = vcmp.lt.s32.totalorder %v497, 32
    %vm524 = vcmp.lt.s32.totalorder %v498, 32
    %vm525 = vcmp.lt.s32.totalorder %v499, 32
    %vm526 = vcmp.lt.s32.totalorder %v500, 32
    %vm527 = vcmp.lt.s32.totalorder %v501, 32
    %vm528 = vcmp.lt.s32.totalorder %v502, 32
    %vm529 = vcmp.lt.s32.totalorder %v503, 32
    %vm530 = vcmp.lt.s32.totalorder %v504, 32
    %vm531 = vcmp.lt.s32.totalorder %v505, 32
    %vm532 = vcmp.lt.s32.totalorder %v506, 32
    %vm533 = vcmp.lt.s32.totalorder %v507, 32
    %vm534 = vmand %vm510, %vm522
    %vm535 = vmand %vm511, %vm523
    %vm536 = vmand %vm512, %vm524
    %vm537 = vmand %vm513, %vm525
    %vm538 = vmand %vm514, %vm526
    %vm539 = vmand %vm515, %vm527
    %vm540 = vmand %vm516, %vm528
    %vm541 = vmand %vm517, %vm529
    %vm542 = vmand %vm518, %vm530
    %vm543 = vmand %vm519, %vm531
    %vm544 = vmand %vm520, %vm532
    %vm545 = vmand %vm521, %vm533
    %vm546 = vcmp.ge.s32.totalorder %v509, 0
    %vm547 = vmand %vm534, %vm546
    %vm548 = vmand %vm535, %vm546
    %vm549 = vmand %vm536, %vm546
    %vm550 = vmand %vm537, %vm546
    %vm551 = vmand %vm538, %vm546
    %vm552 = vmand %vm539, %vm546
    %vm553 = vmand %vm540, %vm546
    %vm554 = vmand %vm541, %vm546
    %vm555 = vmand %vm542, %vm546
    %vm556 = vmand %vm543, %vm546
    %vm557 = vmand %vm544, %vm546
    %vm558 = vmand %vm545, %vm546
    %vm559 = vcmp.lt.s32.totalorder %v509, 32
    %vm560 = vmand %vm547, %vm559
    %vm561 = vmand %vm548, %vm559
    %vm562 = vmand %vm549, %vm559
    %vm563 = vmand %vm550, %vm559
    %vm564 = vmand %vm551, %vm559
    %vm565 = vmand %vm552, %vm559
    %vm566 = vmand %vm553, %vm559
    %vm567 = vmand %vm554, %vm559
    %vm568 = vmand %vm555, %vm559
    %vm569 = vmand %vm556, %vm559
    %vm570 = vmand %vm557, %vm559
    %vm571 = vmand %vm558, %vm559
    %s572 = sld [smem:[#allocation2]]
    %s573 = sld [smem:[#allocation6]]
    %s574 = smul.f32 %s572, %s573
    %v575 = vstv %s574
    %v576 = vsel %vm560, %v575, 0.0
    %v577 = vsel %vm561, %v575, 0.0
    %v578 = vsel %vm562, %v575, 0.0
    %v579 = vsel %vm563, %v575, 0.0
    %v580 = vsel %vm564, %v575, 0.0
    %v581 = vsel %vm565, %v575, 0.0
    %v582 = vsel %vm566, %v575, 0.0
    %v583 = vsel %vm567, %v575, 0.0
    %v584 = vsel %vm568, %v575, 0.0
    %v585 = vsel %vm569, %v575, 0.0
    %v586 = vsel %vm570, %v575, 0.0
    %v587 = vsel %vm571, %v575, 0.0
    %vm588 = vcmp.ge.s32.totalorder %v496, 32
    %vm589 = vcmp.ge.s32.totalorder %v497, 32
    %vm590 = vcmp.ge.s32.totalorder %v498, 32
    %vm591 = vcmp.ge.s32.totalorder %v499, 32
    %vm592 = vcmp.ge.s32.totalorder %v500, 32
    %vm593 = vcmp.ge.s32.totalorder %v501, 32
    %vm594 = vcmp.ge.s32.totalorder %v502, 32
    %vm595 = vcmp.ge.s32.totalorder %v503, 32
    %vm596 = vcmp.ge.s32.totalorder %v504, 32
    %vm597 = vcmp.ge.s32.totalorder %v505, 32
    %vm598 = vcmp.ge.s32.totalorder %v506, 32
    %vm599 = vcmp.ge.s32.totalorder %v507, 32
    %vm600 = vcmp.lt.s32.totalorder %v496, 64
    %vm601 = vcmp.lt.s32.totalorder %v497, 64
    %vm602 = vcmp.lt.s32.totalorder %v498, 64
    %vm603 = vcmp.lt.s32.totalorder %v499, 64
    %vm604 = vcmp.lt.s32.totalorder %v500, 64
    %vm605 = vcmp.lt.s32.totalorder %v501, 64
    %vm606 = vcmp.lt.s32.totalorder %v502, 64
    %vm607 = vcmp.lt.s32.totalorder %v503, 64
    %vm608 = vcmp.lt.s32.totalorder %v504, 64
    %vm609 = vcmp.lt.s32.totalorder %v505, 64
    %vm610 = vcmp.lt.s32.totalorder %v506, 64
    %vm611 = vcmp.lt.s32.totalorder %v507, 64
    %vm612 = vmand %vm588, %vm600
    %vm613 = vmand %vm589, %vm601
    %vm614 = vmand %vm590, %vm602
    %vm615 = vmand %vm591, %vm603
    %vm616 = vmand %vm592, %vm604
    %vm617 = vmand %vm593, %vm605
    %vm618 = vmand %vm594, %vm606
    %vm619 = vmand %vm595, %vm607
    %vm620 = vmand %vm596, %vm608
    %vm621 = vmand %vm597, %vm609
    %vm622 = vmand %vm598, %vm610
    %vm623 = vmand %vm599, %vm611
    %vm624 = vcmp.ge.s32.totalorder %v509, 32
    %vm625 = vmand %vm612, %vm624
    %vm626 = vmand %vm613, %vm624
    %vm627 = vmand %vm614, %vm624
    %vm628 = vmand %vm615, %vm624
    %vm629 = vmand %vm616, %vm624
    %vm630 = vmand %vm617, %vm624
    %vm631 = vmand %vm618, %vm624
    %vm632 = vmand %vm619, %vm624
    %vm633 = vmand %vm620, %vm624
    %vm634 = vmand %vm621, %vm624
    %vm635 = vmand %vm622, %vm624
    %vm636 = vmand %vm623, %vm624
    %vm637 = vcmp.lt.s32.totalorder %v509, 64
    %vm638 = vmand %vm625, %vm637
    %vm639 = vmand %vm626, %vm637
    %vm640 = vmand %vm627, %vm637
    %vm641 = vmand %vm628, %vm637
    %vm642 = vmand %vm629, %vm637
    %vm643 = vmand %vm630, %vm637
    %vm644 = vmand %vm631, %vm637
    %vm645 = vmand %vm632, %vm637
    %vm646 = vmand %vm633, %vm637
    %vm647 = vmand %vm634, %vm637
    %vm648 = vmand %vm635, %vm637
    %vm649 = vmand %vm636, %vm637
    %s650 = sld [smem:[#allocation2 + $0x1]]
    %s651 = sld [smem:[#allocation6 + $0x1]]
    %s652 = smul.f32 %s650, %s651
    %v653 = vstv %s652
    %v654 = vsel %vm638, %v653, %v576
    %v655 = vsel %vm639, %v653, %v577
    %v656 = vsel %vm640, %v653, %v578
    %v657 = vsel %vm641, %v653, %v579
    %v658 = vsel %vm642, %v653, %v580
    %v659 = vsel %vm643, %v653, %v581
    %v660 = vsel %vm644, %v653, %v582
    %v661 = vsel %vm645, %v653, %v583
    %v662 = vsel %vm646, %v653, %v584
    %v663 = vsel %vm647, %v653, %v585
    %v664 = vsel %vm648, %v653, %v586
    %v665 = vsel %vm649, %v653, %v587
    %vm666 = vcmp.ge.s32.totalorder %v496, 64
    %vm667 = vcmp.ge.s32.totalorder %v497, 64
    %vm668 = vcmp.ge.s32.totalorder %v498, 64
    %vm669 = vcmp.ge.s32.totalorder %v499, 64
    %vm670 = vcmp.ge.s32.totalorder %v500, 64
    %vm671 = vcmp.ge.s32.totalorder %v501, 64
    %vm672 = vcmp.ge.s32.totalorder %v502, 64
    %vm673 = vcmp.ge.s32.totalorder %v503, 64
    %vm674 = vcmp.ge.s32.totalorder %v504, 64
    %vm675 = vcmp.ge.s32.totalorder %v505, 64
    %vm676 = vcmp.ge.s32.totalorder %v506, 64
    %vm677 = vcmp.ge.s32.totalorder %v507, 64
    %vm678 = vcmp.lt.s32.totalorder %v496, 96
    %vm679 = vcmp.lt.s32.totalorder %v497, 96
    %vm680 = vcmp.lt.s32.totalorder %v498, 96
    %vm681 = vcmp.lt.s32.totalorder %v499, 96
    %vm682 = vcmp.lt.s32.totalorder %v500, 96
    %vm683 = vcmp.lt.s32.totalorder %v501, 96
    %vm684 = vcmp.lt.s32.totalorder %v502, 96
    %vm685 = vcmp.lt.s32.totalorder %v503, 96
    %vm686 = vcmp.lt.s32.totalorder %v504, 96
    %vm687 = vcmp.lt.s32.totalorder %v505, 96
    %vm688 = vcmp.lt.s32.totalorder %v506, 96
    %vm689 = vcmp.lt.s32.totalorder %v507, 96
    %vm690 = vmand %vm666, %vm678
    %vm691 = vmand %vm667, %vm679
    %vm692 = vmand %vm668, %vm680
    %vm693 = vmand %vm669, %vm681
    %vm694 = vmand %vm670, %vm682
    %vm695 = vmand %vm671, %vm683
    %vm696 = vmand %vm672, %vm684
    %vm697 = vmand %vm673, %vm685
    %vm698 = vmand %vm674, %vm686
    %vm699 = vmand %vm675, %vm687
    %vm700 = vmand %vm676, %vm688
    %vm701 = vmand %vm677, %vm689
    %vm702 = vcmp.ge.s32.totalorder %v509, 64
    %vm703 = vmand %vm690, %vm702
    %vm704 = vmand %vm691, %vm702
    %vm705 = vmand %vm692, %vm702
    %vm706 = vmand %vm693, %vm702
    %vm707 = vmand %vm694, %vm702
    %vm708 = vmand %vm695, %vm702
    %vm709 = vmand %vm696, %vm702
    %vm710 = vmand %vm697, %vm702
    %vm711 = vmand %vm698, %vm702
    %vm712 = vmand %vm699, %vm702
    %vm713 = vmand %vm700, %vm702
    %vm714 = vmand %vm701, %vm702
    %vm715 = vcmp.lt.s32.totalorder %v509, 96
    %vm716 = vmand %vm703, %vm715
    %vm717 = vmand %vm704, %vm715
    %vm718 = vmand %vm705, %vm715
    %vm719 = vmand %vm706, %vm715
    %vm720 = vmand %vm707, %vm715
    %vm721 = vmand %vm708, %vm715
    %vm722 = vmand %vm709, %vm715
    %vm723 = vmand %vm710, %vm715
    %vm724 = vmand %vm711, %vm715
    %vm725 = vmand %vm712, %vm715
    %vm726 = vmand %vm713, %vm715
    %vm727 = vmand %vm714, %vm715
    %s728 = sld [smem:[#allocation2 + $0x2]]
    %s729 = sld [smem:[#allocation6 + $0x2]]
    %s730 = smul.f32 %s728, %s729
    %v731 = vstv %s730
    %v732 = vsel %vm716, %v731, %v654
    %v733 = vsel %vm717, %v731, %v655
    %v734 = vsel %vm718, %v731, %v656
    %v735 = vsel %vm719, %v731, %v657
    %v736 = vsel %vm720, %v731, %v658
    %v737 = vsel %vm721, %v731, %v659
    %v738 = vsel %vm722, %v731, %v660
    %v739 = vsel %vm723, %v731, %v661
    %v740 = vsel %vm724, %v731, %v662
    %v741 = vsel %vm725, %v731, %v663
    %v742 = vsel %vm726, %v731, %v664
    %v743 = vsel %vm727, %v731, %v665
    %v744 = vmul.f32 %v732, %v210
    %v745 = vmul.f32 %v733, %v213
    %v746 = vmul.f32 %v734, %v216
    %v747 = vmul.f32 %v735, %v219
    %v748 = vmul.f32 %v736, %v222
    %v749 = vmul.f32 %v737, %v225
    %v750 = vmul.f32 %v738, %v228
    %v751 = vmul.f32 %v739, %v231
    %v752 = vmul.f32 %v740, %v234
    %v753 = vmul.f32 %v741, %v237
    %v754 = vmul.f32 %v742, %v240
    %v755 = vmul.f32 %v743, %v243
    %v756 = vmul.f32 %v744, %v333
    %v757 = vmul.f32 %v745, %v336
    %v758 = vmul.f32 %v746, %v339
    %v759 = vmul.f32 %v747, %v342
    %v760 = vmul.f32 %v748, %v345
    %v761 = vmul.f32 %v749, %v348
    %v762 = vmul.f32 %v750, %v351
    %v763 = vmul.f32 %v751, %v354
    %v764 = vmul.f32 %v752, %v357
    %v765 = vmul.f32 %v753, %v360
    %v766 = vmul.f32 %v754, %v363
    %v767 = vmul.f32 %v755, %v366
    %v768 = vmul.f32 %v756, %v460
    %v769 = vmul.f32 %v757, %v463
    %v770 = vmul.f32 %v758, %v466
    %v771 = vmul.f32 %v759, %v469
    %v772 = vmul.f32 %v760, %v472
    %v773 = vmul.f32 %v761, %v475
    %v774 = vmul.f32 %v762, %v478
    %v775 = vmul.f32 %v763, %v481
    %v776 = vmul.f32 %v764, %v484
    %v777 = vmul.f32 %v765, %v487
    %v778 = vmul.f32 %v766, %v490
    %v779 = vmul.f32 %v767, %v493
    %vm780 = vcmask 785408
    %v781 = vsel %vm780, %v768, 0.0
    %v782 = vsel %vm780, %v769, 0.0
    %v783 = vadd.f32 %v781, %v782
    %v784 = vsel %vm780, %v770, 0.0
    %v785 = vadd.f32 %v783, %v784
    %v786 = vsel %vm780, %v771, 0.0
    %v787 = vadd.f32 %v785, %v786
    %v788 = vsel %vm780, %v772, 0.0
    %v789 = vadd.f32 %v787, %v788
    %v790 = vsel %vm780, %v773, 0.0
    %v791 = vadd.f32 %v789, %v790
    %v792 = vsel %vm780, %v774, 0.0
    %v793 = vadd.f32 %v791, %v792
    %v794 = vsel %vm780, %v775, 0.0
    %v795 = vadd.f32 %v793, %v794
    %v796 = vsel %vm780, %v776, 0.0
    %v797 = vadd.f32 %v795, %v796
    %v798 = vsel %vm780, %v777, 0.0
    %v799 = vadd.f32 %v797, %v798
    %v800 = vsel %vm780, %v778, 0.0
    %v801 = vadd.f32 %v799, %v800
    %v802 = vsel %vm780, %v779, 0.0
    %v803 = vadd.f32 %v801, %v802
    %804 = vadd.xlane.f32.xlu0 %v803
    %v805 = vpop.xlane.xlu0 %804
    %v806 = vrot.slane %v805, 4
    %v807 = vadd.f32 %v805, %v806
    %v808 = vrot.slane %v807, 2
    %v809 = vadd.f32 %v807, %v808
    %v810 = vrot.slane %v809, 1
    %v811 = vadd.f32 %v809, %v810
    %s812 = vtos %v811
    %v813 = vld [vmem:[%s5] sm:$0x1]
    %v815 = vperm.slane %v813, 0
    %v817 = vmul.f32 %v245, %v815
    %v818 = vld [vmem:[#allocation11] sm:$0xff]
    %v819 = vld [vmem:[#allocation11 + $0x8] sm:$0xff]
    %v820 = vld [vmem:[#allocation11 + $0x10] sm:$0xff]
    %v821 = vld [vmem:[#allocation11 + $0x18] sm:$0xff]
    %v822 = vld [vmem:[#allocation11 + $0x20] sm:$0xff]
    %v823 = vld [vmem:[#allocation11 + $0x28] sm:$0xff]
    %v824 = vld [vmem:[#allocation11 + $0x30] sm:$0xff]
    %v825 = vld [vmem:[#allocation11 + $0x38] sm:$0xff]
    %v826 = vld [vmem:[#allocation11 + $0x40] sm:$0xff]
    %v827 = vld [vmem:[#allocation11 + $0x48] sm:$0xff]
    %v828 = vld [vmem:[#allocation11 + $0x50] sm:$0xff]
    %v829 = vld [vmem:[#allocation11 + $0x58] sm:$0xff]
    %v830 = vld [vmem:[#allocation11 + $0x60] sm:$0xff]
    %v831 = vld [vmem:[#allocation11 + $0x68] sm:$0xff]
    %v832 = vld [vmem:[#allocation11 + $0x70] sm:$0xff]
    %v833 = vld [vmem:[#allocation11 + $0x78] sm:$0xff]
    %v834 = vld [vmem:[#allocation11 + $0x80] sm:$0xff]
    %v835 = vld [vmem:[#allocation11 + $0x88] sm:$0xff]
    %v836 = vld [vmem:[#allocation11 + $0x90] sm:$0xff]
    %v837 = vld [vmem:[#allocation11 + $0x98] sm:$0xff]
    %v838 = vld [vmem:[#allocation11 + $0xa0] sm:$0xff]
    %v839 = vld [vmem:[#allocation11 + $0xa8] sm:$0xff]
    %v840 = vld [vmem:[#allocation11 + $0xb0] sm:$0xff]
    %v841 = vld [vmem:[#allocation11 + $0xb8] sm:$0xff]
    %v842 = vld [vmem:[#allocation12] sm:$0xff]
    %v843 = vld [vmem:[#allocation12 + $0x8] sm:$0xff]
    %v844 = vld [vmem:[#allocation12 + $0x10] sm:$0xff]
    %v846 = vrot.slane %v817, 1
    %v847 = vrot.slane %v817, 2
    %v848 = vrot.slane %v817, 3
    %v849 = vrot.slane %v817, 4
    %v850 = vrot.slane %v817, 5
    %v851 = vrot.slane %v817, 6
    %v852 = vrot.slane %v817, 7
    %v853 = vperm.slane %v817, 0
    %v854 = vperm.slane %v846, 0
    %v855 = vperm.slane %v847, 0
    %v856 = vperm.slane %v848, 0
    %v857 = vperm.slane %v849, 0
    %v858 = vperm.slane %v850, 0
    %v859 = vperm.slane %v851, 0
    %v860 = vperm.slane %v852, 0
    %v869 = vmul.f32 %v818, %v853
    %v870 = vmul.f32 %v819, %v854
    %v871 = vmul.f32 %v820, %v855
    %v872 = vmul.f32 %v821, %v856
    %v873 = vmul.f32 %v822, %v857
    %v874 = vmul.f32 %v823, %v858
    %v875 = vmul.f32 %v824, %v859
    %v876 = vmul.f32 %v825, %v860
    %vm877 = vcmask 261120
    %v878 = vsel %vm877, %v869, 0.0
    %879 = vadd.xlane.f32.xlu0 %v878
    %v880 = vpop.xlane.xlu0 %879
    %v881 = vsel %vm877, %v870, 0.0
    %882 = vadd.xlane.f32.xlu0 %v881
    %v883 = vpop.xlane.xlu0 %882
    %v884 = vsel %vm877, %v871, 0.0
    %885 = vadd.xlane.f32.xlu0 %v884
    %v886 = vpop.xlane.xlu0 %885
    %v887 = vsel %vm877, %v872, 0.0
    %888 = vadd.xlane.f32.xlu0 %v887
    %v889 = vpop.xlane.xlu0 %888
    %v890 = vsel %vm877, %v873, 0.0
    %891 = vadd.xlane.f32.xlu0 %v890
    %v892 = vpop.xlane.xlu0 %891
    %v893 = vsel %vm877, %v874, 0.0
    %894 = vadd.xlane.f32.xlu0 %v893
    %v895 = vpop.xlane.xlu0 %894
    %v896 = vsel %vm877, %v875, 0.0
    %897 = vadd.xlane.f32.xlu0 %v896
    %v898 = vpop.xlane.xlu0 %897
    %v899 = vsel %vm877, %v876, 0.0
    %900 = vadd.xlane.f32.xlu0 %v899
    %v901 = vpop.xlane.xlu0 %900
    %v903 = vperm.slane %v842, 0
    %v904 = vlaneseq
    %v905 = vshrl.u32 %v904, 7
    %907 = vset.pattern.permute.xlu0 %v905
    %908 = vperm.xlu0 %907, %v903
    %v909 = vpop.permute.xlu0 %908
    %v910 = vperm.slane %v842, 1
    %v911 = vlaneseq
    %v912 = vshrl.u32 %v911, 7
    %914 = vset.pattern.permute.xlu0 %v912
    %915 = vperm.xlu0 %914, %v910
    %v916 = vpop.permute.xlu0 %915
    %v917 = vperm.slane %v842, 2
    %v918 = vlaneseq
    %v919 = vshrl.u32 %v918, 7
    %921 = vset.pattern.permute.xlu0 %v919
    %922 = vperm.xlu0 %921, %v917
    %v923 = vpop.permute.xlu0 %922
    %v924 = vperm.slane %v842, 3
    %v925 = vlaneseq
    %v926 = vshrl.u32 %v925, 7
    %928 = vset.pattern.permute.xlu0 %v926
    %929 = vperm.xlu0 %928, %v924
    %v930 = vpop.permute.xlu0 %929
    %v931 = vperm.slane %v842, 4
    %v932 = vlaneseq
    %v933 = vshrl.u32 %v932, 7
    %935 = vset.pattern.permute.xlu0 %v933
    %936 = vperm.xlu0 %935, %v931
    %v937 = vpop.permute.xlu0 %936
    %v938 = vperm.slane %v842, 5
    %v939 = vlaneseq
    %v940 = vshrl.u32 %v939, 7
    %942 = vset.pattern.permute.xlu0 %v940
    %943 = vperm.xlu0 %942, %v938
    %v944 = vpop.permute.xlu0 %943
    %v945 = vperm.slane %v842, 6
    %v946 = vlaneseq
    %v947 = vshrl.u32 %v946, 7
    %949 = vset.pattern.permute.xlu0 %v947
    %950 = vperm.xlu0 %949, %v945
    %v951 = vpop.permute.xlu0 %950
    %v952 = vperm.slane %v842, 7
    %v953 = vlaneseq
    %v954 = vshrl.u32 %v953, 7
    %956 = vset.pattern.permute.xlu0 %v954
    %957 = vperm.xlu0 %956, %v952
    %v958 = vpop.permute.xlu0 %957
    %v967 = vmul.f32 %v880, %v909
    %v968 = vmul.f32 %v883, %v916
    %v969 = vmul.f32 %v886, %v923
    %v970 = vmul.f32 %v889, %v930
    %v971 = vmul.f32 %v892, %v937
    %v972 = vmul.f32 %v895, %v944
    %v973 = vmul.f32 %v898, %v951
    %v974 = vmul.f32 %v901, %v958
    %s975 = ssub.f32 1.0, %s573
    %v976 = vstv %s975
    %v977 = vmul.f32 %v976, %v967
    %v978 = vmul.f32 %v976, %v968
    %v979 = vmul.f32 %v976, %v969
    %v980 = vmul.f32 %v976, %v970
    %v981 = vmul.f32 %v976, %v971
    %v982 = vmul.f32 %v976, %v972
    %v983 = vmul.f32 %v976, %v973
    %v984 = vmul.f32 %v976, %v974
    %v985 = vmul.f32 %v977, %v967
    %v986 = vmul.f32 %v978, %v968
    %v987 = vmul.f32 %v979, %v969
    %v988 = vmul.f32 %v980, %v970
    %v989 = vmul.f32 %v981, %v971
    %v990 = vmul.f32 %v982, %v972
    %v991 = vmul.f32 %v983, %v973
    %v992 = vmul.f32 %v984, %v974
    %v993 = vmul.f32 %v967, 2.0
    %v994 = vmul.f32 %v968, 2.0
    %v995 = vmul.f32 %v969, 2.0
    %v996 = vmul.f32 %v970, 2.0
    %v997 = vmul.f32 %v971, 2.0
    %v998 = vmul.f32 %v972, 2.0
    %v999 = vmul.f32 %v973, 2.0
    %v1000 = vmul.f32 %v974, 2.0
    %v1001 = vsub.f32 %v985, %v993
    %v1002 = vsub.f32 %v986, %v994
    %v1003 = vsub.f32 %v987, %v995
    %v1004 = vsub.f32 %v988, %v996
    %v1005 = vsub.f32 %v989, %v997
    %v1006 = vsub.f32 %v990, %v998
    %v1007 = vsub.f32 %v991, %v999
    %v1008 = vsub.f32 %v992, %v1000
    %1017 = vset.pattern.permute.xlu0 0
    %1018 = vperm.xlu0 %1017, %v1001
    %v1019 = vpop.permute.xlu0 %1018
    %1020 = vset.pattern.permute.xlu0 0
    %1021 = vperm.xlu0 %1020, %v1002
    %v1022 = vpop.permute.xlu0 %1021
    %1023 = vset.pattern.permute.xlu0 0
    %1024 = vperm.xlu0 %1023, %v1003
    %v1025 = vpop.permute.xlu0 %1024
    %1026 = vset.pattern.permute.xlu0 0
    %1027 = vperm.xlu0 %1026, %v1004
    %v1028 = vpop.permute.xlu0 %1027
    %1029 = vset.pattern.permute.xlu0 0
    %1030 = vperm.xlu0 %1029, %v1005
    %v1031 = vpop.permute.xlu0 %1030
    %1032 = vset.pattern.permute.xlu0 0
    %1033 = vperm.xlu0 %1032, %v1006
    %v1034 = vpop.permute.xlu0 %1033
    %1035 = vset.pattern.permute.xlu0 0
    %1036 = vperm.xlu0 %1035, %v1007
    %v1037 = vpop.permute.xlu0 %1036
    %1038 = vset.pattern.permute.xlu0 0
    %1039 = vperm.xlu0 %1038, %v1008
    %v1040 = vpop.permute.xlu0 %1039
    %v1041 = vperm.slane %v1019, %v509
    %v1042 = vperm.slane %v1022, %v509
    %v1043 = vperm.slane %v1025, %v509
    %v1044 = vperm.slane %v1028, %v509
    %v1045 = vperm.slane %v1031, %v509
    %v1046 = vperm.slane %v1034, %v509
    %v1047 = vperm.slane %v1037, %v509
    %v1048 = vperm.slane %v1040, %v509
    %vm1049 = vcmask 1041409
    %v1050 = vsel %vm1049, %v1042, %v1041
    %vm1051 = vcmask 1042434
    %v1052 = vsel %vm1051, %v1043, %v1050
    %vm1053 = vcmask 1043459
    %v1054 = vsel %vm1053, %v1044, %v1052
    %vm1055 = vcmask 1044484
    %v1056 = vsel %vm1055, %v1045, %v1054
    %vm1057 = vcmask 1045509
    %v1058 = vsel %vm1057, %v1046, %v1056
    %vm1059 = vcmask 1046534
    %v1060 = vsel %vm1059, %v1047, %v1058
    %vm1061 = vcmask 1047559
    %v1062 = vsel %vm1061, %v1048, %v1060
    %v1064 = vsel %vm278, %v1062, 0.0
    %1065 = vadd.xlane.f32.xlu0 %v1064
    %v1066 = vpop.xlane.xlu0 %1065
    %v1067 = vrot.slane %v1066, 4
    %v1068 = vadd.f32 %v1066, %v1067
    %v1069 = vrot.slane %v1068, 2
    %v1070 = vadd.f32 %v1068, %v1069
    %v1071 = vrot.slane %v1070, 1
    %v1072 = vadd.f32 %v1070, %v1071
    %s1073 = vtos %v1072
    %s1074 = smul.f32 %s572, %s1073
    %s1075 = sadd.f32 %s812, %s1074
    %1076 = vrot.lane.b32.xlu0 %v853, 96
    %v1077 = vpop.permute.xlu0 %1076
    %1078 = vrot.lane.b32.xlu0 %v854, 96
    %v1079 = vpop.permute.xlu0 %1078
    %1080 = vrot.lane.b32.xlu0 %v855, 96
    %v1081 = vpop.permute.xlu0 %1080
    %1082 = vrot.lane.b32.xlu0 %v856, 96
    %v1083 = vpop.permute.xlu0 %1082
    %1084 = vrot.lane.b32.xlu0 %v857, 96
    %v1085 = vpop.permute.xlu0 %1084
    %1086 = vrot.lane.b32.xlu0 %v858, 96
    %v1087 = vpop.permute.xlu0 %1086
    %1088 = vrot.lane.b32.xlu0 %v859, 96
    %v1089 = vpop.permute.xlu0 %1088
    %1090 = vrot.lane.b32.xlu0 %v860, 96
    %v1091 = vpop.permute.xlu0 %1090
    %v1100 = vmul.f32 %v826, %v1077
    %v1101 = vmul.f32 %v827, %v1079
    %v1102 = vmul.f32 %v828, %v1081
    %v1103 = vmul.f32 %v829, %v1083
    %v1104 = vmul.f32 %v830, %v1085
    %v1105 = vmul.f32 %v831, %v1087
    %v1106 = vmul.f32 %v832, %v1089
    %v1107 = vmul.f32 %v833, %v1091
    %v1108 = vsel %vm877, %v1100, 0.0
    %1109 = vadd.xlane.f32.xlu0 %v1108
    %v1110 = vpop.xlane.xlu0 %1109
    %v1111 = vsel %vm877, %v1101, 0.0
    %1112 = vadd.xlane.f32.xlu0 %v1111
    %v1113 = vpop.xlane.xlu0 %1112
    %v1114 = vsel %vm877, %v1102, 0.0
    %1115 = vadd.xlane.f32.xlu0 %v1114
    %v1116 = vpop.xlane.xlu0 %1115
    %v1117 = vsel %vm877, %v1103, 0.0
    %1118 = vadd.xlane.f32.xlu0 %v1117
    %v1119 = vpop.xlane.xlu0 %1118
    %v1120 = vsel %vm877, %v1104, 0.0
    %1121 = vadd.xlane.f32.xlu0 %v1120
    %v1122 = vpop.xlane.xlu0 %1121
    %v1123 = vsel %vm877, %v1105, 0.0
    %1124 = vadd.xlane.f32.xlu0 %v1123
    %v1125 = vpop.xlane.xlu0 %1124
    %v1126 = vsel %vm877, %v1106, 0.0
    %1127 = vadd.xlane.f32.xlu0 %v1126
    %v1128 = vpop.xlane.xlu0 %1127
    %v1129 = vsel %vm877, %v1107, 0.0
    %1130 = vadd.xlane.f32.xlu0 %v1129
    %v1131 = vpop.xlane.xlu0 %1130
    %v1133 = vperm.slane %v843, 0
    %v1134 = vlaneseq
    %v1135 = vshrl.u32 %v1134, 7
    %1137 = vset.pattern.permute.xlu0 %v1135
    %1138 = vperm.xlu0 %1137, %v1133
    %v1139 = vpop.permute.xlu0 %1138
    %v1140 = vperm.slane %v843, 1
    %v1141 = vlaneseq
    %v1142 = vshrl.u32 %v1141, 7
    %1144 = vset.pattern.permute.xlu0 %v1142
    %1145 = vperm.xlu0 %1144, %v1140
    %v1146 = vpop.permute.xlu0 %1145
    %v1147 = vperm.slane %v843, 2
    %v1148 = vlaneseq
    %v1149 = vshrl.u32 %v1148, 7
    %1151 = vset.pattern.permute.xlu0 %v1149
    %1152 = vperm.xlu0 %1151, %v1147
    %v1153 = vpop.permute.xlu0 %1152
    %v1154 = vperm.slane %v843, 3
    %v1155 = vlaneseq
    %v1156 = vshrl.u32 %v1155, 7
    %1158 = vset.pattern.permute.xlu0 %v1156
    %1159 = vperm.xlu0 %1158, %v1154
    %v1160 = vpop.permute.xlu0 %1159
    %v1161 = vperm.slane %v843, 4
    %v1162 = vlaneseq
    %v1163 = vshrl.u32 %v1162, 7
    %1165 = vset.pattern.permute.xlu0 %v1163
    %1166 = vperm.xlu0 %1165, %v1161
    %v1167 = vpop.permute.xlu0 %1166
    %v1168 = vperm.slane %v843, 5
    %v1169 = vlaneseq
    %v1170 = vshrl.u32 %v1169, 7
    %1172 = vset.pattern.permute.xlu0 %v1170
    %1173 = vperm.xlu0 %1172, %v1168
    %v1174 = vpop.permute.xlu0 %1173
    %v1175 = vperm.slane %v843, 6
    %v1176 = vlaneseq
    %v1177 = vshrl.u32 %v1176, 7
    %1179 = vset.pattern.permute.xlu0 %v1177
    %1180 = vperm.xlu0 %1179, %v1175
    %v1181 = vpop.permute.xlu0 %1180
    %v1182 = vperm.slane %v843, 7
    %v1183 = vlaneseq
    %v1184 = vshrl.u32 %v1183, 7
    %1186 = vset.pattern.permute.xlu0 %v1184
    %1187 = vperm.xlu0 %1186, %v1182
    %v1188 = vpop.permute.xlu0 %1187
    %v1197 = vmul.f32 %v1110, %v1139
    %v1198 = vmul.f32 %v1113, %v1146
    %v1199 = vmul.f32 %v1116, %v1153
    %v1200 = vmul.f32 %v1119, %v1160
    %v1201 = vmul.f32 %v1122, %v1167
    %v1202 = vmul.f32 %v1125, %v1174
    %v1203 = vmul.f32 %v1128, %v1181
    %v1204 = vmul.f32 %v1131, %v1188
    %s1205 = ssub.f32 1.0, %s651
    %v1206 = vstv %s1205
    %v1207 = vmul.f32 %v1206, %v1197
    %v1208 = vmul.f32 %v1206, %v1198
    %v1209 = vmul.f32 %v1206, %v1199
    %v1210 = vmul.f32 %v1206, %v1200
    %v1211 = vmul.f32 %v1206, %v1201
    %v1212 = vmul.f32 %v1206, %v1202
    %v1213 = vmul.f32 %v1206, %v1203
    %v1214 = vmul.f32 %v1206, %v1204
    %v1215 = vmul.f32 %v1207, %v1197
    %v1216 = vmul.f32 %v1208, %v1198
    %v1217 = vmul.f32 %v1209, %v1199
    %v1218 = vmul.f32 %v1210, %v1200
    %v1219 = vmul.f32 %v1211, %v1201
    %v1220 = vmul.f32 %v1212, %v1202
    %v1221 = vmul.f32 %v1213, %v1203
    %v1222 = vmul.f32 %v1214, %v1204
    %v1223 = vmul.f32 %v1197, 2.0
    %v1224 = vmul.f32 %v1198, 2.0
    %v1225 = vmul.f32 %v1199, 2.0
    %v1226 = vmul.f32 %v1200, 2.0
    %v1227 = vmul.f32 %v1201, 2.0
    %v1228 = vmul.f32 %v1202, 2.0
    %v1229 = vmul.f32 %v1203, 2.0
    %v1230 = vmul.f32 %v1204, 2.0
    %v1231 = vsub.f32 %v1215, %v1223
    %v1232 = vsub.f32 %v1216, %v1224
    %v1233 = vsub.f32 %v1217, %v1225
    %v1234 = vsub.f32 %v1218, %v1226
    %v1235 = vsub.f32 %v1219, %v1227
    %v1236 = vsub.f32 %v1220, %v1228
    %v1237 = vsub.f32 %v1221, %v1229
    %v1238 = vsub.f32 %v1222, %v1230
    %1247 = vset.pattern.permute.xlu0 0
    %1248 = vperm.xlu0 %1247, %v1231
    %v1249 = vpop.permute.xlu0 %1248
    %1250 = vset.pattern.permute.xlu0 0
    %1251 = vperm.xlu0 %1250, %v1232
    %v1252 = vpop.permute.xlu0 %1251
    %1253 = vset.pattern.permute.xlu0 0
    %1254 = vperm.xlu0 %1253, %v1233
    %v1255 = vpop.permute.xlu0 %1254
    %1256 = vset.pattern.permute.xlu0 0
    %1257 = vperm.xlu0 %1256, %v1234
    %v1258 = vpop.permute.xlu0 %1257
    %1259 = vset.pattern.permute.xlu0 0
    %1260 = vperm.xlu0 %1259, %v1235
    %v1261 = vpop.permute.xlu0 %1260
    %1262 = vset.pattern.permute.xlu0 0
    %1263 = vperm.xlu0 %1262, %v1236
    %v1264 = vpop.permute.xlu0 %1263
    %1265 = vset.pattern.permute.xlu0 0
    %1266 = vperm.xlu0 %1265, %v1237
    %v1267 = vpop.permute.xlu0 %1266
    %1268 = vset.pattern.permute.xlu0 0
    %1269 = vperm.xlu0 %1268, %v1238
    %v1270 = vpop.permute.xlu0 %1269
    %v1271 = vperm.slane %v1249, %v509
    %v1272 = vperm.slane %v1252, %v509
    %v1273 = vperm.slane %v1255, %v509
    %v1274 = vperm.slane %v1258, %v509
    %v1275 = vperm.slane %v1261, %v509
    %v1276 = vperm.slane %v1264, %v509
    %v1277 = vperm.slane %v1267, %v509
    %v1278 = vperm.slane %v1270, %v509
    %v1279 = vsel %vm1049, %v1272, %v1271
    %v1280 = vsel %vm1051, %v1273, %v1279
    %v1281 = vsel %vm1053, %v1274, %v1280
    %v1282 = vsel %vm1055, %v1275, %v1281
    %v1283 = vsel %vm1057, %v1276, %v1282
    %v1284 = vsel %vm1059, %v1277, %v1283
    %v1285 = vsel %vm1061, %v1278, %v1284
    %v1287 = vsel %vm278, %v1285, 0.0
    %1288 = vadd.xlane.f32.xlu0 %v1287
    %v1289 = vpop.xlane.xlu0 %1288
    %v1290 = vrot.slane %v1289, 4
    %v1291 = vadd.f32 %v1289, %v1290
    %v1292 = vrot.slane %v1291, 2
    %v1293 = vadd.f32 %v1291, %v1292
    %v1294 = vrot.slane %v1293, 1
    %v1295 = vadd.f32 %v1293, %v1294
    %s1296 = vtos %v1295
    %s1297 = smul.f32 %s650, %s1296
    %s1298 = sadd.f32 %s1075, %s1297
    %1299 = vrot.lane.b32.xlu0 %v853, 64
    %v1300 = vpop.permute.xlu0 %1299
    %1301 = vrot.lane.b32.xlu0 %v854, 64
    %v1302 = vpop.permute.xlu0 %1301
    %1303 = vrot.lane.b32.xlu0 %v855, 64
    %v1304 = vpop.permute.xlu0 %1303
    %1305 = vrot.lane.b32.xlu0 %v856, 64
    %v1306 = vpop.permute.xlu0 %1305
    %1307 = vrot.lane.b32.xlu0 %v857, 64
    %v1308 = vpop.permute.xlu0 %1307
    %1309 = vrot.lane.b32.xlu0 %v858, 64
    %v1310 = vpop.permute.xlu0 %1309
    %1311 = vrot.lane.b32.xlu0 %v859, 64
    %v1312 = vpop.permute.xlu0 %1311
    %1313 = vrot.lane.b32.xlu0 %v860, 64
    %v1314 = vpop.permute.xlu0 %1313
    %v1323 = vmul.f32 %v834, %v1300
    %v1324 = vmul.f32 %v835, %v1302
    %v1325 = vmul.f32 %v836, %v1304
    %v1326 = vmul.f32 %v837, %v1306
    %v1327 = vmul.f32 %v838, %v1308
    %v1328 = vmul.f32 %v839, %v1310
    %v1329 = vmul.f32 %v840, %v1312
    %v1330 = vmul.f32 %v841, %v1314
    %v1331 = vsel %vm877, %v1323, 0.0
    %1332 = vadd.xlane.f32.xlu0 %v1331
    %v1333 = vpop.xlane.xlu0 %1332
    %v1334 = vsel %vm877, %v1324, 0.0
    %1335 = vadd.xlane.f32.xlu0 %v1334
    %v1336 = vpop.xlane.xlu0 %1335
    %v1337 = vsel %vm877, %v1325, 0.0
    %1338 = vadd.xlane.f32.xlu0 %v1337
    %v1339 = vpop.xlane.xlu0 %1338
    %v1340 = vsel %vm877, %v1326, 0.0
    %1341 = vadd.xlane.f32.xlu0 %v1340
    %v1342 = vpop.xlane.xlu0 %1341
    %v1343 = vsel %vm877, %v1327, 0.0
    %1344 = vadd.xlane.f32.xlu0 %v1343
    %v1345 = vpop.xlane.xlu0 %1344
    %v1346 = vsel %vm877, %v1328, 0.0
    %1347 = vadd.xlane.f32.xlu0 %v1346
    %v1348 = vpop.xlane.xlu0 %1347
    %v1349 = vsel %vm877, %v1329, 0.0
    %1350 = vadd.xlane.f32.xlu0 %v1349
    %v1351 = vpop.xlane.xlu0 %1350
    %v1352 = vsel %vm877, %v1330, 0.0
    %1353 = vadd.xlane.f32.xlu0 %v1352
    %v1354 = vpop.xlane.xlu0 %1353
    %v1356 = vperm.slane %v844, 0
    %v1357 = vlaneseq
    %v1358 = vshrl.u32 %v1357, 7
    %1360 = vset.pattern.permute.xlu0 %v1358
    %1361 = vperm.xlu0 %1360, %v1356
    %v1362 = vpop.permute.xlu0 %1361
    %v1363 = vperm.slane %v844, 1
    %v1364 = vlaneseq
    %v1365 = vshrl.u32 %v1364, 7
    %1367 = vset.pattern.permute.xlu0 %v1365
    %1368 = vperm.xlu0 %1367, %v1363
    %v1369 = vpop.permute.xlu0 %1368
    %v1370 = vperm.slane %v844, 2
    %v1371 = vlaneseq
    %v1372 = vshrl.u32 %v1371, 7
    %1374 = vset.pattern.permute.xlu0 %v1372
    %1375 = vperm.xlu0 %1374, %v1370
    %v1376 = vpop.permute.xlu0 %1375
    %v1377 = vperm.slane %v844, 3
    %v1378 = vlaneseq
    %v1379 = vshrl.u32 %v1378, 7
    %1381 = vset.pattern.permute.xlu0 %v1379
    %1382 = vperm.xlu0 %1381, %v1377
    %v1383 = vpop.permute.xlu0 %1382
    %v1384 = vperm.slane %v844, 4
    %v1385 = vlaneseq
    %v1386 = vshrl.u32 %v1385, 7
    %1388 = vset.pattern.permute.xlu0 %v1386
    %1389 = vperm.xlu0 %1388, %v1384
    %v1390 = vpop.permute.xlu0 %1389
    %v1391 = vperm.slane %v844, 5
    %v1392 = vlaneseq
    %v1393 = vshrl.u32 %v1392, 7
    %1395 = vset.pattern.permute.xlu0 %v1393
    %1396 = vperm.xlu0 %1395, %v1391
    %v1397 = vpop.permute.xlu0 %1396
    %v1398 = vperm.slane %v844, 6
    %v1399 = vlaneseq
    %v1400 = vshrl.u32 %v1399, 7
    %1402 = vset.pattern.permute.xlu0 %v1400
    %1403 = vperm.xlu0 %1402, %v1398
    %v1404 = vpop.permute.xlu0 %1403
    %v1405 = vperm.slane %v844, 7
    %v1406 = vlaneseq
    %v1407 = vshrl.u32 %v1406, 7
    %1409 = vset.pattern.permute.xlu0 %v1407
    %1410 = vperm.xlu0 %1409, %v1405
    %v1411 = vpop.permute.xlu0 %1410
    %v1420 = vmul.f32 %v1333, %v1362
    %v1421 = vmul.f32 %v1336, %v1369
    %v1422 = vmul.f32 %v1339, %v1376
    %v1423 = vmul.f32 %v1342, %v1383
    %v1424 = vmul.f32 %v1345, %v1390
    %v1425 = vmul.f32 %v1348, %v1397
    %v1426 = vmul.f32 %v1351, %v1404
    %v1427 = vmul.f32 %v1354, %v1411
    %s1428 = ssub.f32 1.0, %s729
    %v1429 = vstv %s1428
    %v1430 = vmul.f32 %v1429, %v1420
    %v1431 = vmul.f32 %v1429, %v1421
    %v1432 = vmul.f32 %v1429, %v1422
    %v1433 = vmul.f32 %v1429, %v1423
    %v1434 = vmul.f32 %v1429, %v1424
    %v1435 = vmul.f32 %v1429, %v1425
    %v1436 = vmul.f32 %v1429, %v1426
    %v1437 = vmul.f32 %v1429, %v1427
    %v1438 = vmul.f32 %v1430, %v1420
    %v1439 = vmul.f32 %v1431, %v1421
    %v1440 = vmul.f32 %v1432, %v1422
    %v1441 = vmul.f32 %v1433, %v1423
    %v1442 = vmul.f32 %v1434, %v1424
    %v1443 = vmul.f32 %v1435, %v1425
    %v1444 = vmul.f32 %v1436, %v1426
    %v1445 = vmul.f32 %v1437, %v1427
    %v1446 = vmul.f32 %v1420, 2.0
    %v1447 = vmul.f32 %v1421, 2.0
    %v1448 = vmul.f32 %v1422, 2.0
    %v1449 = vmul.f32 %v1423, 2.0
    %v1450 = vmul.f32 %v1424, 2.0
    %v1451 = vmul.f32 %v1425, 2.0
    %v1452 = vmul.f32 %v1426, 2.0
    %v1453 = vmul.f32 %v1427, 2.0
    %v1454 = vsub.f32 %v1438, %v1446
    %v1455 = vsub.f32 %v1439, %v1447
    %v1456 = vsub.f32 %v1440, %v1448
    %v1457 = vsub.f32 %v1441, %v1449
    %v1458 = vsub.f32 %v1442, %v1450
    %v1459 = vsub.f32 %v1443, %v1451
    %v1460 = vsub.f32 %v1444, %v1452
    %v1461 = vsub.f32 %v1445, %v1453
    %1470 = vset.pattern.permute.xlu0 0
    %1471 = vperm.xlu0 %1470, %v1454
    %v1472 = vpop.permute.xlu0 %1471
    %1473 = vset.pattern.permute.xlu0 0
    %1474 = vperm.xlu0 %1473, %v1455
    %v1475 = vpop.permute.xlu0 %1474
    %1476 = vset.pattern.permute.xlu0 0
    %1477 = vperm.xlu0 %1476, %v1456
    %v1478 = vpop.permute.xlu0 %1477
    %1479 = vset.pattern.permute.xlu0 0
    %1480 = vperm.xlu0 %1479, %v1457
    %v1481 = vpop.permute.xlu0 %1480
    %1482 = vset.pattern.permute.xlu0 0
    %1483 = vperm.xlu0 %1482, %v1458
    %v1484 = vpop.permute.xlu0 %1483
    %1485 = vset.pattern.permute.xlu0 0
    %1486 = vperm.xlu0 %1485, %v1459
    %v1487 = vpop.permute.xlu0 %1486
    %1488 = vset.pattern.permute.xlu0 0
    %1489 = vperm.xlu0 %1488, %v1460
    %v1490 = vpop.permute.xlu0 %1489
    %1491 = vset.pattern.permute.xlu0 0
    %1492 = vperm.xlu0 %1491, %v1461
    %v1493 = vpop.permute.xlu0 %1492
    %v1494 = vperm.slane %v1472, %v509
    %v1495 = vperm.slane %v1475, %v509
    %v1496 = vperm.slane %v1478, %v509
    %v1497 = vperm.slane %v1481, %v509
    %v1498 = vperm.slane %v1484, %v509
    %v1499 = vperm.slane %v1487, %v509
    %v1500 = vperm.slane %v1490, %v509
    %v1501 = vperm.slane %v1493, %v509
    %v1502 = vsel %vm1049, %v1495, %v1494
    %v1503 = vsel %vm1051, %v1496, %v1502
    %v1504 = vsel %vm1053, %v1497, %v1503
    %v1505 = vsel %vm1055, %v1498, %v1504
    %v1506 = vsel %vm1057, %v1499, %v1505
    %v1507 = vsel %vm1059, %v1500, %v1506
    %v1508 = vsel %vm1061, %v1501, %v1507
    %v1510 = vsel %vm278, %v1508, 0.0
    %1511 = vadd.xlane.f32.xlu0 %v1510
    %v1512 = vpop.xlane.xlu0 %1511
    %v1513 = vrot.slane %v1512, 4
    %v1514 = vadd.f32 %v1512, %v1513
    %v1515 = vrot.slane %v1514, 2
    %v1516 = vadd.f32 %v1514, %v1515
    %v1517 = vrot.slane %v1516, 1
    %v1518 = vadd.f32 %v1516, %v1517
    %s1519 = vtos %v1518
    %s1520 = smul.f32 %s728, %s1519
    %s1521 = sadd.f32 %s1298, %s1520
    %v1522 = vmul.f32 %v245, %v245
    %v1523 = vsel %vm780, %v1522, 0.0
    %1524 = vadd.xlane.f32.xlu0 %v1523
    %v1525 = vpop.xlane.xlu0 %1524
    %v1526 = vrot.slane %v1525, 4
    %v1527 = vadd.f32 %v1525, %v1526
    %v1528 = vrot.slane %v1527, 2
    %v1529 = vadd.f32 %v1527, %v1528
    %v1530 = vrot.slane %v1529, 1
    %v1531 = vadd.f32 %v1529, %v1530
    %s1532 = vtos %v1531
    %v1533 = vmul.f32 %v116, %v116
    %v1534 = vmul.f32 %v117, %v117
    %v1535 = vmul.f32 %v118, %v118
    %v1536 = vsel %vm780, %v1533, 0.0
    %v1537 = vsel %vm780, %v1534, 0.0
    %v1538 = vadd.f32 %v1536, %v1537
    %vm1539 = vcmask 778240
    %v1540 = vsel %vm1539, %v1535, 0.0
    %v1541 = vadd.f32 %v1538, %v1540
    %1542 = vadd.xlane.f32.xlu0 %v1541
    %v1543 = vpop.xlane.xlu0 %1542
    %v1544 = vrot.slane %v1543, 4
    %v1545 = vadd.f32 %v1543, %v1544
    %v1546 = vrot.slane %v1545, 2
    %v1547 = vadd.f32 %v1545, %v1546
    %v1548 = vrot.slane %v1547, 1
    %v1549 = vadd.f32 %v1547, %v1548
    %s1550 = vtos %v1549
    %s1551 = sadd.f32 %s1532, %s1550
    %vm1552 = vcmp.eq.s32.totalorder %v509, 0
    %v1553 = vstv %s1521
    %v1554 = vsel %vm1552, %v1553, 0.0
    %vm1555 = vcmp.eq.s32.totalorder %v509, 1
    %v1556 = vstv %s1551
    %v1557 = vsel %vm1555, %v1556, 0.0
    %v1558 = vadd.f32 %v1554, %v1557
    %1559 = vst [vmem:[#allocation14] sm:$0x1] %v1558
    // Predicated region
    $region58: #{tpu_custom_call.1} parent=1 // pred_check
      _
    $region59: #{tpu_custom_call.1} parent=1 // pred_check_branch
      %1561 = sbr.rel (0) target = $region61
    $region60: #{tpu_custom_call.1} parent=1 // pred_region
      %1563 = vsyncadd [#allocation4], 0
      %s1565 = sshll.u32 [#allocation14], 4
      %s1566 = int_to_ptr.vmem [resolvable:$true] %s1565
      %s1567 = sshll.u32 %s8, 4
      %s1568 = int_to_ptr.hbm [resolvable:$true] %s1567
      %1570 = dma.vmem_to_hbm [thread:$0]  %s1566, 16, %s1568, [#allocation4]
    $region61: #{tpu_custom_call.1} parent=1 // pred_fallthru
      _
    // Predicated region
    $region62: #{tpu_custom_call.1} parent=1 // pred_check
      _
    $region63: #{tpu_custom_call.1} parent=1 // pred_check_branch
      %1572 = sbr.rel (0) target = $region65
    $region64: #{tpu_custom_call.1} parent=1 // pred_region
      %1574 = dma.done [#allocation4], 16
    $region65: #{tpu_custom_call.1} parent=1 // pred_fallthru
      _
    %1575 = vsyncpa [#allocation3], 1
    %1576 = vsyncpa [#allocation10], 1
    %1577 = vsyncpa [#allocation13], 1
    %1578 = vsyncpa [#allocation4], 1
    %1579 = vsyncpa [#allocation5], 1
    %1580 = vsyncpa [#allocation7], 1

</llo_original>
